<compile_context>
chip_gen: v7x
topology: tpu7x:2x2x1
jax: 0.10.0
libtpu: 0.0.40
codegen_flags: <defaults>
</compile_context>

<pallas_src>
import functools

import jax
import jax.numpy as jnp
from jax import lax
from jax.experimental import pallas as pl
from jax.experimental.pallas import tpu as pltpu

# x @ W.T for torch-layout (out_features, in_features) weights: contract the
# LAST dim of both operands -> no weight transpose (XLU relayout) per step.
_CONTRACT_LAST = (((1,), (1,)), ((), ()))


def _attention_kernel(q_ref, x_ref, wk_ref, wv_ref, wqh_ref, wph_ref, bias_ref,
                      out_ref, attn_ref, k_scr, v_scr, *,
                      num_heads, head_dim, scale, fold_attn_lanes):
    H, hd = num_heads, head_dim
    mm = q_ref.dtype                       # bf16 MXU operands, f32 accumulation
    m = pl.program_id(1)

    # ---- K/V projection: hoisted out of the M loop (once per batch element).
    @pl.when(m == 0)
    def _project_kv():
        x = x_ref[0]                                               # (N, C)
        k = lax.dot_general(x, wk_ref[...], _CONTRACT_LAST,
                            preferred_element_type=jnp.float32)    # (N, C) f32
        v = lax.dot_general(x, wv_ref[...], _CONTRACT_LAST,
                            preferred_element_type=jnp.float32)    # (N, C) f32
        # Head-major scratch (H, N, hd); the per-head lane slices happen ONLY
        # here (amortized over all M tiles of this batch element).
        for h in range(H):
            sl = slice(h * hd, (h + 1) * hd)
            k_scr[h] = k[:, sl].astype(mm)
            v_scr[h] = v[:, sl].astype(mm)

    # ---- Q projection, batched over heads in a single MXU op (no head loop).
    q = q_ref[0]                                                   # (TM, C)
    tm = q.shape[0]
    q_b = jnp.broadcast_to(q[None, :, :], (H, tm, q.shape[1]))     # (H, TM, C)
    qh = jnp.einsum('hqc,hdc->hqd', q_b, wqh_ref[...],
                    preferred_element_type=jnp.float32)            # (H, TM, hd)
    qh = (qh * scale).astype(mm)       # scale folded into the small q tensor

    # ---- Scores + numerically stable softmax (strictly f32).
    s = jnp.einsum('hqd,hnd->hqn', qh, k_scr[...],
                   preferred_element_type=jnp.float32)             # (H, TM, N)
    s = s - jnp.max(s, axis=-1, keepdims=True)
    p = jnp.exp(s)
    p = p * pl.reciprocal(jnp.sum(p, axis=-1, keepdims=True), approx=True)

    # ---- attn output: lane-dense folded layout when N is not lane-aligned.
    if fold_attn_lanes:
        attn_ref[0] = p.reshape(H, -1).astype(attn_ref.dtype)      # (H, TM*N)
    else:
        attn_ref[0] = p.astype(attn_ref.dtype)                     # (H, TM, N)

    # ---- attn @ V, batched over heads.
    o = jnp.einsum('hqn,hnd->hqd', p.astype(mm), v_scr[...],
                   preferred_element_type=jnp.float32)             # (H, TM, hd)

    # ---- Output projection folded per head (no (H,TM,hd)->(TM,C) transpose):
    # out[q, c_out] = sum_h sum_d o[h, q, d] * w_proj[c_out, h*hd + d]
    oh = jnp.einsum('hqd,hod->hqo', o.astype(mm), wph_ref[...],
                    preferred_element_type=jnp.float32)            # (H, TM, C)
    out = jnp.sum(oh, axis=0) + bias_ref[...]                      # (TM, C) f32
    out_ref[0] = out.astype(out_ref.dtype)


def _pick_query_tile(M, tile_cap=128):
    """Largest query tile <= tile_cap that divides M and keeps blocks legal."""
    if M <= tile_cap:
        return M
    for t in range(tile_cap, 0, -1):
        if M % t == 0 and t % 8 == 0:
            return t
    return M          # legal fallback: block equals the full dim


def _const_spec(shape):
    """Constant-index (weight/bias) block; single-buffered when supported."""
    ndim = len(shape)
    index_map = lambda b, m: (0,) * ndim
    try:
        return pl.BlockSpec(shape, index_map, pipeline_mode=pl.Buffered(1))
    except (AttributeError, TypeError, ValueError):
        return pl.BlockSpec(shape, index_map)


def attention_forward(q, x, w_kv, w_q, w_proj, b_proj, *, num_heads,
                      matmul_dtype=jnp.bfloat16, attn_dtype=jnp.bfloat16,
                      tile_cap=128):
    B, M, C = q.shape
    _, N, _ = x.shape
    assert C % num_heads == 0
    head_dim = C // num_heads
    scale = head_dim ** (-0.5)
    out_dtype = q.dtype

    tm = _pick_query_tile(M, tile_cap)
    grid = (B, M // tm)

    # Fold (tm, N) into the lane axis when N alone would force masked stores
    # and the folded block stays (8,128)-legal.
    fold_attn_lanes = (N % 128 != 0) and (((tm * N) % 128 == 0) or tm == M)

    # Wrapper-side operand prep (free w.r.t. the kernel): bf16 MXU operands,
    # kv weight split into k / v halves, per-head weight layouts.
    qc = q.astype(matmul_dtype)
    xc = x.astype(matmul_dtype)
    w_k = w_kv[:C].astype(matmul_dtype)                                 # (C, C)
    w_v = w_kv[C:].astype(matmul_dtype)                                 # (C, C)
    w_q_h = w_q.reshape(num_heads, head_dim, C).astype(matmul_dtype)    # (H,hd,C)
    w_p_h = jnp.transpose(w_proj.reshape(C, num_heads, head_dim),
                          (1, 0, 2)).astype(matmul_dtype)               # (H,C,hd)
    bias = b_proj.reshape(1, C).astype(jnp.float32)

    kernel = functools.partial(
        _attention_kernel, num_heads=num_heads, head_dim=head_dim,
        scale=scale, fold_attn_lanes=fold_attn_lanes)

    if fold_attn_lanes:
        attn_shape = jax.ShapeDtypeStruct((B, num_heads, M * N), attn_dtype)
        attn_spec = pl.BlockSpec((1, num_heads, tm * N), lambda b, m: (b, 0, m))
    else:
        attn_shape = jax.ShapeDtypeStruct((B, num_heads, M, N), attn_dtype)
        attn_spec = pl.BlockSpec((1, num_heads, tm, N),
                                 lambda b, m: (b, 0, m, 0))

    grid_spec = pltpu.PrefetchScalarGridSpec(
        num_scalar_prefetch=0,
        grid=grid,
        in_specs=[
            pl.BlockSpec((1, tm, C), lambda b, m: (b, m, 0)),   # q tile
            pl.BlockSpec((1, N, C), lambda b, m: (b, 0, 0)),    # x (per batch)
            _const_spec((C, C)),                                # W_k
            _const_spec((C, C)),                                # W_v
            _const_spec((num_heads, head_dim, C)),              # W_q  per head
            _const_spec((num_heads, C, head_dim)),              # W_proj per head
            _const_spec((1, C)),                                # proj bias
        ],
        out_specs=[
            pl.BlockSpec((1, tm, C), lambda b, m: (b, m, 0)),   # out tile
            attn_spec,                                          # attn tile
        ],
        scratch_shapes=[
            pltpu.VMEM((num_heads, N, head_dim), matmul_dtype),  # K scratch
            pltpu.VMEM((num_heads, N, head_dim), matmul_dtype),  # V scratch
        ],
    )

    out, attn = pl.pallas_call(
        kernel,
        out_shape=(jax.ShapeDtypeStruct((B, M, C), out_dtype), attn_shape),
        grid_spec=grid_spec,
        compiler_params=pltpu.CompilerParams(
            # B is "parallel" (keeps the v7x 2-TC split); M must be "arbitrary"
            # because the K/V scratch is carried across M tiles.
            dimension_semantics=("parallel", "arbitrary"),
            # 32 MiB scoped VMEM: safe on v7x (64 MiB physical) and >= the
            # v5e/v6e defaults.
            vmem_limit_bytes=32 * 1024 * 1024),
    )(qc, xc, w_k, w_v, w_q_h, w_p_h, bias)

    if fold_attn_lanes:
        attn = attn.reshape(B, num_heads, M, N)
    return out, attn


def attention_reference(q, x, w_kv, w_q, w_proj, b_proj, *, num_heads):
    """Plain-JAX (f32) mirror of the PyTorch forward, for correctness checks."""
    B, M, C = q.shape
    _, N, _ = x.shape
    hd = C // num_heads
    scale = hd ** (-0.5)

    kv = jnp.einsum('bnc,oc->bno', x, w_kv)                  # (B, N, 2C)
    kv = kv.reshape(B, N, 2, num_heads, hd).transpose(2, 0, 3, 1, 4)
    k, v = kv[0], kv[1]                                      # (B, H, N, hd)
    qp = jnp.einsum('bmc,oc->bmo', q, w_q)
    qp = qp.reshape(B, M, 1, num_heads, hd).transpose(2, 0, 3, 1, 4)[0]
    attn = jnp.einsum('bhmd,bhnd->bhmn', qp, k) * scale
    attn = jax.nn.softmax(attn, axis=-1)
    out = jnp.einsum('bhmn,bhnd->bhmd', attn, v)
    out = out.transpose(0, 2, 1, 3).reshape(B, M, C)
    out = jnp.einsum('bmc,oc->bmo', out, w_proj) + b_proj
    return out, attn


if __name__ == "__main__":
    B, M, N, C = 2, 8, 16, 32
    num_heads = 8

    key = jax.random.PRNGKey(0)
    kq, kx, k1, k2, k3, k4 = jax.random.split(key, 6)

    q = jax.random.normal(kq, (B, M, C), dtype=jnp.float32)
    x = jax.random.normal(kx, (B, N, C), dtype=jnp.float32)

    # Deterministic parameters (torch Linear layout: (out_features, in_features)).
    w_kv = jax.random.normal(k1, (2 * C, C), dtype=jnp.float32) * 0.05  # qkv_bias=False
    w_q = jax.random.normal(k2, (C, C), dtype=jnp.float32) * 0.05       # qkv_bias=False
    w_proj = jax.random.normal(k3, (C, C), dtype=jnp.float32) * 0.05
    b_proj = jax.random.normal(k4, (C,), dtype=jnp.float32) * 0.05

    out, attn = attention_forward(q, x, w_kv, w_q, w_proj, b_proj,
                                  num_heads=num_heads)
    jax.block_until_ready((out, attn))

    ref_out, ref_attn = attention_reference(q, x, w_kv, w_q, w_proj, b_proj,
                                            num_heads=num_heads)
    assert out.shape == (B, M, C)
    assert attn.shape == (B, num_heads, M, N)
    # Tolerances absorb bf16 MXU operands and the bf16 attn store
    # (f32 accumulation and f32 softmax throughout).
    assert jnp.allclose(out.astype(jnp.float32), ref_out, atol=2e-2, rtol=2e-2)
    assert jnp.allclose(attn.astype(jnp.float32), ref_attn, atol=2e-2, rtol=2e-2)

    print("KERNEL_OK")
</pallas_src>

<mosaic_0001>
module attributes {stable_mosaic.version = 11 : i64} {
  func.func @_attention_kernel(%arg0: i32, %arg1: i32, %arg2: memref<1x8x32xbf16, #tpu.memory_space<vmem>>, %arg3: memref<1x16x32xbf16, #tpu.memory_space<vmem>>, %arg4: memref<32x32xbf16, #tpu.memory_space<vmem>>, %arg5: memref<32x32xbf16, #tpu.memory_space<vmem>>, %arg6: memref<8x4x32xbf16, #tpu.memory_space<vmem>>, %arg7: memref<8x32x4xbf16, #tpu.memory_space<vmem>>, %arg8: memref<1x32xf32, #tpu.memory_space<vmem>>, %arg9: memref<1x8x32xf32, #tpu.memory_space<vmem>>, %arg10: memref<1x8x128xbf16, #tpu.memory_space<vmem>>, %arg11: memref<8x16x4xbf16, #tpu.memory_space<vmem>>, %arg12: memref<8x16x4xbf16, #tpu.memory_space<vmem>>) attributes {dimension_semantics = [#tpu.dimension_semantics<parallel>, #tpu.dimension_semantics<arbitrary>], iteration_bounds = array<i64: 2, 1>, scalar_prefetch = 0 : i64, scratch_operands = 2 : i64, tpu.core_type = #tpu.core_type<tc>, window_params = [{transform_indices = @transform_0, window_bounds = array<i64: 1, 8, 32>}, {transform_indices = @transform_1, window_bounds = array<i64: 1, 16, 32>}, {pipeline_mode = #tpu.pipeline_mode<synchronous>, transform_indices = @transform_2, window_bounds = array<i64: 32, 32>}, {pipeline_mode = #tpu.pipeline_mode<synchronous>, transform_indices = @transform_3, window_bounds = array<i64: 32, 32>}, {pipeline_mode = #tpu.pipeline_mode<synchronous>, transform_indices = @transform_4, window_bounds = array<i64: 8, 4, 32>}, {pipeline_mode = #tpu.pipeline_mode<synchronous>, transform_indices = @transform_5, window_bounds = array<i64: 8, 32, 4>}, {pipeline_mode = #tpu.pipeline_mode<synchronous>, transform_indices = @transform_6, window_bounds = array<i64: 1, 32>}, {transform_indices = @transform_7, window_bounds = array<i64: 1, 8, 32>}, {transform_indices = @transform_8, window_bounds = array<i64: 1, 8, 128>}]} {
    %c0_i32 = arith.constant 0 : i32
    %0 = arith.cmpi eq, %arg1, %c0_i32 : i32
    %1 = arith.extui %0 : i1 to i32
    %c0_i32_0 = arith.constant 0 : i32
    %2 = arith.cmpi ne, %1, %c0_i32_0 : i32
    scf.if %2 {
      %c0_30 = arith.constant 0 : index
      %c0_31 = arith.constant 0 : index
      %c0_32 = arith.constant 0 : index
      %43 = vector.load %arg3[%c0_30, %c0_31, %c0_32] : memref<1x16x32xbf16, #tpu.memory_space<vmem>>, vector<1x16x32xbf16>
      %44 = vector.shape_cast %43 : vector<1x16x32xbf16> to vector<16x32xbf16>
      %c0_33 = arith.constant 0 : index
      %c0_34 = arith.constant 0 : index
      %45 = vector.load %arg4[%c0_33, %c0_34] : memref<32x32xbf16, #tpu.memory_space<vmem>>, vector<32x32xbf16>
      %cst_35 = arith.constant dense<0.000000e+00> : vector<16x32xf32>
      %46 = tpu.matmul %44, %45, %cst_35 {dimension_numbers = #tpu.dot_dimension_numbers<[1], [1], [0], [0], [0, 0, 1, 0], [], []>} : vector<16x32xbf16>, vector<32x32xbf16>, vector<16x32xf32> -> vector<16x32xf32>
      %c0_36 = arith.constant 0 : index
      %c0_37 = arith.constant 0 : index
      %47 = vector.load %arg5[%c0_36, %c0_37] : memref<32x32xbf16, #tpu.memory_space<vmem>>, vector<32x32xbf16>
      %cst_38 = arith.constant dense<0.000000e+00> : vector<16x32xf32>
      %48 = tpu.matmul %44, %47, %cst_38 {dimension_numbers = #tpu.dot_dimension_numbers<[1], [1], [0], [0], [0, 0, 1, 0], [], []>} : vector<16x32xbf16>, vector<32x32xbf16>, vector<16x32xf32> -> vector<16x32xf32>
      %49 = vector.extract_strided_slice %46 {offsets = [0, 0], sizes = [16, 4], strides = [1, 1]} : vector<16x32xf32> to vector<16x4xf32>
      %50 = arith.truncf %49 : vector<16x4xf32> to vector<16x4xbf16>
      %c0_39 = arith.constant 0 : index
      %c0_40 = arith.constant 0 : index
      %c0_41 = arith.constant 0 : index
      %51 = vector.load %arg11[%c0_39, %c0_40, %c0_41] : memref<8x16x4xbf16, #tpu.memory_space<vmem>>, vector<1x16x4xbf16>
      %52 = vector.shape_cast %51 : vector<1x16x4xbf16> to vector<16x4xbf16>
      %53 = vector.shape_cast %50 : vector<16x4xbf16> to vector<1x16x4xbf16>
      tpu.vector_store %arg11[%c0_39, %c0_40, %c0_41], %53 {strides = array<i32>} : memref<8x16x4xbf16, #tpu.memory_space<vmem>>, vector<1x16x4xbf16>,
      %54 = vector.extract_strided_slice %48 {offsets = [0, 0], sizes = [16, 4], strides = [1, 1]} : vector<16x32xf32> to vector<16x4xf32>
      %55 = arith.truncf %54 : vector<16x4xf32> to vector<16x4xbf16>
      %c0_42 = arith.constant 0 : index
      %c0_43 = arith.constant 0 : index
      %c0_44 = arith.constant 0 : index
      %56 = vector.load %arg12[%c0_42, %c0_43, %c0_44] : memref<8x16x4xbf16, #tpu.memory_space<vmem>>, vector<1x16x4xbf16>
      %57 = vector.shape_cast %56 : vector<1x16x4xbf16> to vector<16x4xbf16>
      %58 = vector.shape_cast %55 : vector<16x4xbf16> to vector<1x16x4xbf16>
      tpu.vector_store %arg12[%c0_42, %c0_43, %c0_44], %58 {strides = array<i32>} : memref<8x16x4xbf16, #tpu.memory_space<vmem>>, vector<1x16x4xbf16>,
      %59 = vector.extract_strided_slice %46 {offsets = [0, 4], sizes = [16, 4], strides = [1, 1]} : vector<16x32xf32> to vector<16x4xf32>
      %60 = arith.truncf %59 : vector<16x4xf32> to vector<16x4xbf16>
      %c1 = arith.constant 1 : index
      %c0_45 = arith.constant 0 : index
      %c0_46 = arith.constant 0 : index
      %61 = vector.load %arg11[%c1, %c0_45, %c0_46] : memref<8x16x4xbf16, #tpu.memory_space<vmem>>, vector<1x16x4xbf16>
      %62 = vector.shape_cast %61 : vector<1x16x4xbf16> to vector<16x4xbf16>
      %63 = vector.shape_cast %60 : vector<16x4xbf16> to vector<1x16x4xbf16>
      tpu.vector_store %arg11[%c1, %c0_45, %c0_46], %63 {strides = array<i32>} : memref<8x16x4xbf16, #tpu.memory_space<vmem>>, vector<1x16x4xbf16>,
      %64 = vector.extract_strided_slice %48 {offsets = [0, 4], sizes = [16, 4], strides = [1, 1]} : vector<16x32xf32> to vector<16x4xf32>
      %65 = arith.truncf %64 : vector<16x4xf32> to vector<16x4xbf16>
      %c1_47 = arith.constant 1 : index
      %c0_48 = arith.constant 0 : index
      %c0_49 = arith.constant 0 : index
      %66 = vector.load %arg12[%c1_47, %c0_48, %c0_49] : memref<8x16x4xbf16, #tpu.memory_space<vmem>>, vector<1x16x4xbf16>
      %67 = vector.shape_cast %66 : vector<1x16x4xbf16> to vector<16x4xbf16>
      %68 = vector.shape_cast %65 : vector<16x4xbf16> to vector<1x16x4xbf16>
      tpu.vector_store %arg12[%c1_47, %c0_48, %c0_49], %68 {strides = array<i32>} : memref<8x16x4xbf16, #tpu.memory_space<vmem>>, vector<1x16x4xbf16>,
      %69 = vector.extract_strided_slice %46 {offsets = [0, 8], sizes = [16, 4], strides = [1, 1]} : vector<16x32xf32> to vector<16x4xf32>
      %70 = arith.truncf %69 : vector<16x4xf32> to vector<16x4xbf16>
      %c2 = arith.constant 2 : index
      %c0_50 = arith.constant 0 : index
      %c0_51 = arith.constant 0 : index
      %71 = vector.load %arg11[%c2, %c0_50, %c0_51] : memref<8x16x4xbf16, #tpu.memory_space<vmem>>, vector<1x16x4xbf16>
      %72 = vector.shape_cast %71 : vector<1x16x4xbf16> to vector<16x4xbf16>
      %73 = vector.shape_cast %70 : vector<16x4xbf16> to vector<1x16x4xbf16>
      tpu.vector_store %arg11[%c2, %c0_50, %c0_51], %73 {strides = array<i32>} : memref<8x16x4xbf16, #tpu.memory_space<vmem>>, vector<1x16x4xbf16>,
      %74 = vector.extract_strided_slice %48 {offsets = [0, 8], sizes = [16, 4], strides = [1, 1]} : vector<16x32xf32> to vector<16x4xf32>
      %75 = arith.truncf %74 : vector<16x4xf32> to vector<16x4xbf16>
      %c2_52 = arith.constant 2 : index
      %c0_53 = arith.constant 0 : index
      %c0_54 = arith.constant 0 : index
      %76 = vector.load %arg12[%c2_52, %c0_53, %c0_54] : memref<8x16x4xbf16, #tpu.memory_space<vmem>>, vector<1x16x4xbf16>
      %77 = vector.shape_cast %76 : vector<1x16x4xbf16> to vector<16x4xbf16>
      %78 = vector.shape_cast %75 : vector<16x4xbf16> to vector<1x16x4xbf16>
      tpu.vector_store %arg12[%c2_52, %c0_53, %c0_54], %78 {strides = array<i32>} : memref<8x16x4xbf16, #tpu.memory_space<vmem>>, vector<1x16x4xbf16>,
      %79 = vector.extract_strided_slice %46 {offsets = [0, 12], sizes = [16, 4], strides = [1, 1]} : vector<16x32xf32> to vector<16x4xf32>
      %80 = arith.truncf %79 : vector<16x4xf32> to vector<16x4xbf16>
      %c3 = arith.constant 3 : index
      %c0_55 = arith.constant 0 : index
      %c0_56 = arith.constant 0 : index
      %81 = vector.load %arg11[%c3, %c0_55, %c0_56] : memref<8x16x4xbf16, #tpu.memory_space<vmem>>, vector<1x16x4xbf16>
      %82 = vector.shape_cast %81 : vector<1x16x4xbf16> to vector<16x4xbf16>
      %83 = vector.shape_cast %80 : vector<16x4xbf16> to vector<1x16x4xbf16>
      tpu.vector_store %arg11[%c3, %c0_55, %c0_56], %83 {strides = array<i32>} : memref<8x16x4xbf16, #tpu.memory_space<vmem>>, vector<1x16x4xbf16>,
      %84 = vector.extract_strided_slice %48 {offsets = [0, 12], sizes = [16, 4], strides = [1, 1]} : vector<16x32xf32> to vector<16x4xf32>
      %85 = arith.truncf %84 : vector<16x4xf32> to vector<16x4xbf16>
      %c3_57 = arith.constant 3 : index
      %c0_58 = arith.constant 0 : index
      %c0_59 = arith.constant 0 : index
      %86 = vector.load %arg12[%c3_57, %c0_58, %c0_59] : memref<8x16x4xbf16, #tpu.memory_space<vmem>>, vector<1x16x4xbf16>
      %87 = vector.shape_cast %86 : vector<1x16x4xbf16> to vector<16x4xbf16>
      %88 = vector.shape_cast %85 : vector<16x4xbf16> to vector<1x16x4xbf16>
      tpu.vector_store %arg12[%c3_57, %c0_58, %c0_59], %88 {strides = array<i32>} : memref<8x16x4xbf16, #tpu.memory_space<vmem>>, vector<1x16x4xbf16>,
      %89 = vector.extract_strided_slice %46 {offsets = [0, 16], sizes = [16, 4], strides = [1, 1]} : vector<16x32xf32> to vector<16x4xf32>
      %90 = arith.truncf %89 : vector<16x4xf32> to vector<16x4xbf16>
      %c4 = arith.constant 4 : index
      %c0_60 = arith.constant 0 : index
      %c0_61 = arith.constant 0 : index
      %91 = vector.load %arg11[%c4, %c0_60, %c0_61] : memref<8x16x4xbf16, #tpu.memory_space<vmem>>, vector<1x16x4xbf16>
      %92 = vector.shape_cast %91 : vector<1x16x4xbf16> to vector<16x4xbf16>
      %93 = vector.shape_cast %90 : vector<16x4xbf16> to vector<1x16x4xbf16>
      tpu.vector_store %arg11[%c4, %c0_60, %c0_61], %93 {strides = array<i32>} : memref<8x16x4xbf16, #tpu.memory_space<vmem>>, vector<1x16x4xbf16>,
      %94 = vector.extract_strided_slice %48 {offsets = [0, 16], sizes = [16, 4], strides = [1, 1]} : vector<16x32xf32> to vector<16x4xf32>
      %95 = arith.truncf %94 : vector<16x4xf32> to vector<16x4xbf16>
      %c4_62 = arith.constant 4 : index
      %c0_63 = arith.constant 0 : index
      %c0_64 = arith.constant 0 : index
      %96 = vector.load %arg12[%c4_62, %c0_63, %c0_64] : memref<8x16x4xbf16, #tpu.memory_space<vmem>>, vector<1x16x4xbf16>
      %97 = vector.shape_cast %96 : vector<1x16x4xbf16> to vector<16x4xbf16>
      %98 = vector.shape_cast %95 : vector<16x4xbf16> to vector<1x16x4xbf16>
      tpu.vector_store %arg12[%c4_62, %c0_63, %c0_64], %98 {strides = array<i32>} : memref<8x16x4xbf16, #tpu.memory_space<vmem>>, vector<1x16x4xbf16>,
      %99 = vector.extract_strided_slice %46 {offsets = [0, 20], sizes = [16, 4], strides = [1, 1]} : vector<16x32xf32> to vector<16x4xf32>
      %100 = arith.truncf %99 : vector<16x4xf32> to vector<16x4xbf16>
      %c5 = arith.constant 5 : index
      %c0_65 = arith.constant 0 : index
      %c0_66 = arith.constant 0 : index
      %101 = vector.load %arg11[%c5, %c0_65, %c0_66] : memref<8x16x4xbf16, #tpu.memory_space<vmem>>, vector<1x16x4xbf16>
      %102 = vector.shape_cast %101 : vector<1x16x4xbf16> to vector<16x4xbf16>
      %103 = vector.shape_cast %100 : vector<16x4xbf16> to vector<1x16x4xbf16>
      tpu.vector_store %arg11[%c5, %c0_65, %c0_66], %103 {strides = array<i32>} : memref<8x16x4xbf16, #tpu.memory_space<vmem>>, vector<1x16x4xbf16>,
      %104 = vector.extract_strided_slice %48 {offsets = [0, 20], sizes = [16, 4], strides = [1, 1]} : vector<16x32xf32> to vector<16x4xf32>
      %105 = arith.truncf %104 : vector<16x4xf32> to vector<16x4xbf16>
      %c5_67 = arith.constant 5 : index
      %c0_68 = arith.constant 0 : index
      %c0_69 = arith.constant 0 : index
      %106 = vector.load %arg12[%c5_67, %c0_68, %c0_69] : memref<8x16x4xbf16, #tpu.memory_space<vmem>>, vector<1x16x4xbf16>
      %107 = vector.shape_cast %106 : vector<1x16x4xbf16> to vector<16x4xbf16>
      %108 = vector.shape_cast %105 : vector<16x4xbf16> to vector<1x16x4xbf16>
      tpu.vector_store %arg12[%c5_67, %c0_68, %c0_69], %108 {strides = array<i32>} : memref<8x16x4xbf16, #tpu.memory_space<vmem>>, vector<1x16x4xbf16>,
      %109 = vector.extract_strided_slice %46 {offsets = [0, 24], sizes = [16, 4], strides = [1, 1]} : vector<16x32xf32> to vector<16x4xf32>
      %110 = arith.truncf %109 : vector<16x4xf32> to vector<16x4xbf16>
      %c6 = arith.constant 6 : index
      %c0_70 = arith.constant 0 : index
      %c0_71 = arith.constant 0 : index
      %111 = vector.load %arg11[%c6, %c0_70, %c0_71] : memref<8x16x4xbf16, #tpu.memory_space<vmem>>, vector<1x16x4xbf16>
      %112 = vector.shape_cast %111 : vector<1x16x4xbf16> to vector<16x4xbf16>
      %113 = vector.shape_cast %110 : vector<16x4xbf16> to vector<1x16x4xbf16>
      tpu.vector_store %arg11[%c6, %c0_70, %c0_71], %113 {strides = array<i32>} : memref<8x16x4xbf16, #tpu.memory_space<vmem>>, vector<1x16x4xbf16>,
      %114 = vector.extract_strided_slice %48 {offsets = [0, 24], sizes = [16, 4], strides = [1, 1]} : vector<16x32xf32> to vector<16x4xf32>
      %115 = arith.truncf %114 : vector<16x4xf32> to vector<16x4xbf16>
      %c6_72 = arith.constant 6 : index
      %c0_73 = arith.constant 0 : index
      %c0_74 = arith.constant 0 : index
      %116 = vector.load %arg12[%c6_72, %c0_73, %c0_74] : memref<8x16x4xbf16, #tpu.memory_space<vmem>>, vector<1x16x4xbf16>
      %117 = vector.shape_cast %116 : vector<1x16x4xbf16> to vector<16x4xbf16>
      %118 = vector.shape_cast %115 : vector<16x4xbf16> to vector<1x16x4xbf16>
      tpu.vector_store %arg12[%c6_72, %c0_73, %c0_74], %118 {strides = array<i32>} : memref<8x16x4xbf16, #tpu.memory_space<vmem>>, vector<1x16x4xbf16>,
      %119 = vector.extract_strided_slice %46 {offsets = [0, 28], sizes = [16, 4], strides = [1, 1]} : vector<16x32xf32> to vector<16x4xf32>
      %120 = arith.truncf %119 : vector<16x4xf32> to vector<16x4xbf16>
      %c7 = arith.constant 7 : index
      %c0_75 = arith.constant 0 : index
      %c0_76 = arith.constant 0 : index
      %121 = vector.load %arg11[%c7, %c0_75, %c0_76] : memref<8x16x4xbf16, #tpu.memory_space<vmem>>, vector<1x16x4xbf16>
      %122 = vector.shape_cast %121 : vector<1x16x4xbf16> to vector<16x4xbf16>
      %123 = vector.shape_cast %120 : vector<16x4xbf16> to vector<1x16x4xbf16>
      tpu.vector_store %arg11[%c7, %c0_75, %c0_76], %123 {strides = array<i32>} : memref<8x16x4xbf16, #tpu.memory_space<vmem>>, vector<1x16x4xbf16>,
      %124 = vector.extract_strided_slice %48 {offsets = [0, 28], sizes = [16, 4], strides = [1, 1]} : vector<16x32xf32> to vector<16x4xf32>
      %125 = arith.truncf %124 : vector<16x4xf32> to vector<16x4xbf16>
      %c7_77 = arith.constant 7 : index
      %c0_78 = arith.constant 0 : index
      %c0_79 = arith.constant 0 : index
      %126 = vector.load %arg12[%c7_77, %c0_78, %c0_79] : memref<8x16x4xbf16, #tpu.memory_space<vmem>>, vector<1x16x4xbf16>
      %127 = vector.shape_cast %126 : vector<1x16x4xbf16> to vector<16x4xbf16>
      %128 = vector.shape_cast %125 : vector<16x4xbf16> to vector<1x16x4xbf16>
      tpu.vector_store %arg12[%c7_77, %c0_78, %c0_79], %128 {strides = array<i32>} : memref<8x16x4xbf16, #tpu.memory_space<vmem>>, vector<1x16x4xbf16>,
    } else {
    }
    %c0 = arith.constant 0 : index
    %c0_1 = arith.constant 0 : index
    %c0_2 = arith.constant 0 : index
    %3 = vector.load %arg2[%c0, %c0_1, %c0_2] : memref<1x8x32xbf16, #tpu.memory_space<vmem>>, vector<1x8x32xbf16>
    %4 = vector.shape_cast %3 : vector<1x8x32xbf16> to vector<8x32xbf16>
    %5 = vector.shape_cast %4 : vector<8x32xbf16> to vector<1x8x32xbf16>
    %6 = vector.shape_cast %5 : vector<1x8x32xbf16> to vector<1x8x32xbf16>
    %7 = vector.broadcast %6 : vector<1x8x32xbf16> to vector<8x8x32xbf16>
    %c0_3 = arith.constant 0 : index
    %c0_4 = arith.constant 0 : index
    %c0_5 = arith.constant 0 : index
    %8 = vector.load %arg6[%c0_3, %c0_4, %c0_5] : memref<8x4x32xbf16, #tpu.memory_space<vmem>>, vector<8x4x32xbf16>
    "tpu.trace_start"() <{level = 10 : i32, message = "hqc,hdc->hqd"}> : () -> ()
    %cst = arith.constant dense<0.000000e+00> : vector<8x8x4xf32>
    %9 = tpu.matmul %7, %8, %cst {dimension_numbers = #tpu.dot_dimension_numbers<[2], [2], [1], [1], [0, 0, 0, 1, 1, 1], [0], [0]>} : vector<8x8x32xbf16>, vector<8x4x32xbf16>, vector<8x8x4xf32> -> vector<8x8x4xf32>
    "tpu.trace_stop"() : () -> ()
    %cst_6 = arith.constant 5.000000e-01 : f32
    %10 = vector.broadcast %cst_6 : f32 to vector<8x8x4xf32>
    %11 = arith.mulf %9, %10 : vector<8x8x4xf32>
    %12 = arith.truncf %11 : vector<8x8x4xf32> to vector<8x8x4xbf16>
    %c0_7 = arith.constant 0 : index
    %c0_8 = arith.constant 0 : index
    %c0_9 = arith.constant 0 : index
    %13 = vector.load %arg11[%c0_7, %c0_8, %c0_9] : memref<8x16x4xbf16, #tpu.memory_space<vmem>>, vector<8x16x4xbf16>
    "tpu.trace_start"() <{level = 10 : i32, message = "hqd,hnd->hqn"}> : () -> ()
    %cst_10 = arith.constant dense<0.000000e+00> : vector<8x8x16xf32>
    %14 = tpu.matmul %12, %13, %cst_10 {dimension_numbers = #tpu.dot_dimension_numbers<[2], [2], [1], [1], [0, 0, 0, 1, 1, 1], [0], [0]>} : vector<8x8x4xbf16>, vector<8x16x4xbf16>, vector<8x8x16xf32> -> vector<8x8x16xf32>
    "tpu.trace_stop"() : () -> ()
    %cst_11 = arith.constant dense<0xFF800000> : vector<8x8xf32>
    %15 = vector.multi_reduction <maximumf>, %14, %cst_11 [2] : vector<8x8x16xf32> to vector<8x8xf32>
    %16 = vector.shape_cast %15 : vector<8x8xf32> to vector<8x8x1xf32>
    %17 = vector.broadcast %16 : vector<8x8x1xf32> to vector<8x8x16xf32>
    %18 = arith.subf %14, %17 : vector<8x8x16xf32>
    %19 = math.exp %18 : vector<8x8x16xf32>
    %cst_12 = arith.constant dense<0.000000e+00> : vector<8x8xf32>
    %20 = vector.multi_reduction <add>, %19, %cst_12 [2] : vector<8x8x16xf32> to vector<8x8xf32>
    %21 = vector.shape_cast %20 : vector<8x8xf32> to vector<8x8x1xf32>
    %22 = tpu.reciprocal %21 {approx = true} : vector<8x8x1xf32> -> vector<8x8x1xf32>
    %23 = vector.broadcast %22 : vector<8x8x1xf32> to vector<8x8x16xf32>
    %24 = arith.mulf %19, %23 : vector<8x8x16xf32>
    %25 = vector.shape_cast %24 : vector<8x8x16xf32> to vector<8x128xf32>
    %26 = arith.truncf %25 : vector<8x128xf32> to vector<8x128xbf16>
    %c0_13 = arith.constant 0 : index
    %c0_14 = arith.constant 0 : index
    %c0_15 = arith.constant 0 : index
    %27 = vector.load %arg10[%c0_13, %c0_14, %c0_15] : memref<1x8x128xbf16, #tpu.memory_space<vmem>>, vector<1x8x128xbf16>
    %28 = vector.shape_cast %27 : vector<1x8x128xbf16> to vector<8x128xbf16>
    %29 = vector.shape_cast %26 : vector<8x128xbf16> to vector<1x8x128xbf16>
    tpu.vector_store %arg10[%c0_13, %c0_14, %c0_15], %29 {strides = array<i32>} : memref<1x8x128xbf16, #tpu.memory_space<vmem>>, vector<1x8x128xbf16>,
    %30 = arith.truncf %24 : vector<8x8x16xf32> to vector<8x8x16xbf16>
    %c0_16 = arith.constant 0 : index
    %c0_17 = arith.constant 0 : index
    %c0_18 = arith.constant 0 : index
    %31 = vector.load %arg12[%c0_16, %c0_17, %c0_18] : memref<8x16x4xbf16, #tpu.memory_space<vmem>>, vector<8x16x4xbf16>
    "tpu.trace_start"() <{level = 10 : i32, message = "hqn,hnd->hqd"}> : () -> ()
    %cst_19 = arith.constant dense<0.000000e+00> : vector<8x8x4xf32>
    %32 = tpu.matmul %30, %31, %cst_19 {dimension_numbers = #tpu.dot_dimension_numbers<[2], [1], [1], [2], [0, 0, 0, 1, 1, 2], [0], [0]>} : vector<8x8x16xbf16>, vector<8x16x4xbf16>, vector<8x8x4xf32> -> vector<8x8x4xf32>
    "tpu.trace_stop"() : () -> ()
    %33 = arith.truncf %32 : vector<8x8x4xf32> to vector<8x8x4xbf16>
    %c0_20 = arith.constant 0 : index
    %c0_21 = arith.constant 0 : index
    %c0_22 = arith.constant 0 : index
    %34 = vector.load %arg7[%c0_20, %c0_21, %c0_22] : memref<8x32x4xbf16, #tpu.memory_space<vmem>>, vector<8x32x4xbf16>
    "tpu.trace_start"() <{level = 10 : i32, message = "hqd,hod->hqo"}> : () -> ()
    %cst_23 = arith.constant dense<0.000000e+00> : vector<8x8x32xf32>
    %35 = tpu.matmul %33, %34, %cst_23 {dimension_numbers = #tpu.dot_dimension_numbers<[2], [2], [1], [1], [0, 0, 0, 1, 1, 1], [0], [0]>} : vector<8x8x4xbf16>, vector<8x32x4xbf16>, vector<8x8x32xf32> -> vector<8x8x32xf32>
    "tpu.trace_stop"() : () -> ()
    %cst_24 = arith.constant dense<0.000000e+00> : vector<8x32xf32>
    %36 = vector.multi_reduction <add>, %35, %cst_24 [0] : vector<8x8x32xf32> to vector<8x32xf32>
    %c0_25 = arith.constant 0 : index
    %c0_26 = arith.constant 0 : index
    %37 = vector.load %arg8[%c0_25, %c0_26] : memref<1x32xf32, #tpu.memory_space<vmem>>, vector<1x32xf32>
    %38 = vector.broadcast %37 : vector<1x32xf32> to vector<8x32xf32>
    %39 = arith.addf %36, %38 : vector<8x32xf32>
    %c0_27 = arith.constant 0 : index
    %c0_28 = arith.constant 0 : index
    %c0_29 = arith.constant 0 : index
    %40 = vector.load %arg9[%c0_27, %c0_28, %c0_29] : memref<1x8x32xf32, #tpu.memory_space<vmem>>, vector<1x8x32xf32>
    %41 = vector.shape_cast %40 : vector<1x8x32xf32> to vector<8x32xf32>
    %42 = vector.shape_cast %39 : vector<8x32xf32> to vector<1x8x32xf32>
    tpu.vector_store %arg9[%c0_27, %c0_28, %c0_29], %42 {strides = array<i32>} : memref<1x8x32xf32, #tpu.memory_space<vmem>>, vector<1x8x32xf32>,
    return
  }
  func.func @transform_0(%arg0: i32, %arg1: i32) -> (i32, i32, i32) {
    %c0_i32 = arith.constant 0 : i32
    %c0_i32_0 = arith.constant 0 : i32
    return %arg0, %arg1, %c0_i32 : i32, i32, i32
  }
  func.func @transform_1(%arg0: i32, %arg1: i32) -> (i32, i32, i32) {
    %c0_i32 = arith.constant 0 : i32
    %c0_i32_0 = arith.constant 0 : i32
    %c0_i32_1 = arith.constant 0 : i32
    return %arg0, %c0_i32, %c0_i32_0 : i32, i32, i32
  }
  func.func @transform_2(%arg0: i32, %arg1: i32) -> (i32, i32) {
    %c0_i32 = arith.constant 0 : i32
    %c0_i32_0 = arith.constant 0 : i32
    %c0_i32_1 = arith.constant 0 : i32
    return %c0_i32, %c0_i32_0 : i32, i32
  }
  func.func @transform_3(%arg0: i32, %arg1: i32) -> (i32, i32) {
    %c0_i32 = arith.constant 0 : i32
    %c0_i32_0 = arith.constant 0 : i32
    %c0_i32_1 = arith.constant 0 : i32
    return %c0_i32, %c0_i32_0 : i32, i32
  }
  func.func @transform_4(%arg0: i32, %arg1: i32) -> (i32, i32, i32) {
    %c0_i32 = arith.constant 0 : i32
    %c0_i32_0 = arith.constant 0 : i32
    %c0_i32_1 = arith.constant 0 : i32
    %c0_i32_2 = arith.constant 0 : i32
    return %c0_i32, %c0_i32_0, %c0_i32_1 : i32, i32, i32
  }
  func.func @transform_5(%arg0: i32, %arg1: i32) -> (i32, i32, i32) {
    %c0_i32 = arith.constant 0 : i32
    %c0_i32_0 = arith.constant 0 : i32
    %c0_i32_1 = arith.constant 0 : i32
    %c0_i32_2 = arith.constant 0 : i32
    return %c0_i32, %c0_i32_0, %c0_i32_1 : i32, i32, i32
  }
  func.func @transform_6(%arg0: i32, %arg1: i32) -> (i32, i32) {
    %c0_i32 = arith.constant 0 : i32
    %c0_i32_0 = arith.constant 0 : i32
    %c0_i32_1 = arith.constant 0 : i32
    return %c0_i32, %c0_i32_0 : i32, i32
  }
  func.func @transform_7(%arg0: i32, %arg1: i32) -> (i32, i32, i32) {
    %c0_i32 = arith.constant 0 : i32
    %c0_i32_0 = arith.constant 0 : i32
    return %arg0, %arg1, %c0_i32 : i32, i32, i32
  }
  func.func @transform_8(%arg0: i32, %arg1: i32) -> (i32, i32, i32) {
    %c0_i32 = arith.constant 0 : i32
    %c0_i32_0 = arith.constant 0 : i32
    return %arg0, %c0_i32, %arg1 : i32, i32, i32
  }
}

</mosaic_0001>

<llo_original>
// kernel: tpu_custom_call.1
$region0: #{tpu_custom_call.1}
  #allocation0 [shape = 'u32[]', space=smem, size = 0x4, offset = 0x4, fixed_abs, tag = 'smem constant byte address 0x4 - core index']
  #allocation1 [shape = 'u32[144,128]{1,0:T(1,128)}', space=vmem, size = 0x12000, scoped, tag = 'internal scratch']
  #allocation2 [shape = 'bf16[8,16,4]{2,1,0:T(16,128)(2,1)}', space=vmem, size = 0x8000, scoped, tag = 'scratch operand']
  #allocation3 [shape = 'bf16[8,16,4]{2,1,0:T(16,128)(2,1)}', space=vmem, size = 0x8000, scoped, tag = 'scratch operand']
  %s0 = inlined_call_operand.vmem [shape: bf16[2,8,32], index: 0, kind: input, shape index: {}]
  %s1 = inlined_call_operand.vmem [shape: bf16[2,16,32], index: 1, kind: input, shape index: {}]
  %s2 = inlined_call_operand.vmem [shape: bf16[32,32], index: 2, kind: input, shape index: {}]
  %s3 = inlined_call_operand.vmem [shape: bf16[32,32], index: 3, kind: input, shape index: {}]
  %s4 = inlined_call_operand.vmem [shape: bf16[8,4,32], index: 4, kind: input, shape index: {}]
  %s5 = inlined_call_operand.vmem [shape: bf16[8,32,4], index: 5, kind: input, shape index: {}]
  %s6 = inlined_call_operand.vmem [shape: f32[1,32], index: 6, kind: input, shape index: {}]
  %s7 = inlined_call_operand.hbm [shape: f32[2,8,32], index: 7, kind: output, shape index: {0}]
  %s8 = inlined_call_operand.hbm [shape: bf16[2,8,128], index: 8, kind: output, shape index: {1}]
  %9 = xla_tuple %s7, %s8
  %s10 = sld [smem:[#allocation0]]
  $region73: #{tpu_custom_call.1} parent=0
    _
  %s12 = ssub.s32 1, %s10
  %s13 = scalar_select 0, %s12, %s10
  $region1: #{tpu_custom_call.1} parent=0
    #allocation4 [shape = 'u8[8192]{0}', space=vmem, size = 0x2000, scoped, tag = 'output window, operand 0']
    #allocation5 [shape = 's32[2]{0}', space=sflag, size = 0x8, scoped, tag = 'scoped memory for tpu_custom_call.1']
    #allocation6 [shape = 'u8[4096]{0}', space=vmem, size = 0x1000, scoped, tag = 'output window, operand 1']
    #allocation7 [shape = 's32[2]{0}', space=sflag, size = 0x8, scoped, tag = 'scoped memory for tpu_custom_call.1']
    %14 = vsyncpa [#allocation5], 0
    %s15 = scalar_lea.sflag [#allocation5], 1
    %16 = vsyncpa %s15, 0
    %17 = vsyncpa [#allocation7], 0
    %s18 = scalar_lea.sflag [#allocation7], 1
    %19 = vsyncpa %s18, 0
    loop: start=0, step=1, limit=4
    $region2: #{tpu_custom_call.1} parent=1 // loop_pre_header
      _
    $region3: #{tpu_custom_call.1} parent=1 // loop_header
      %s21 = sphi 0, %s25
      %p22 = scmp.ge.s32.totalorder %s21, 4
      %s28 = sphi 0, %s40
      %s29 = sphi 0, %s36
      %s30 = sphi 0, %s28
      %s31 = sphi 0, %s29
      %s32 = sphi 0, %s30
      %s33 = sphi 0, %s31
      %s45 = sphi 0, %s47
      %s48 = sphi 0, %s45
      %s49 = sphi 0, %s48
      %s65 = sphi 0, %s49
      %s71 = sphi 0, %s73
      %s74 = sphi 0, %s71
      %s75 = sphi 0, %s74
      %s91 = sphi 0, %s75
      %s95 = sphi 0, %s95
      %s97 = sphi 0, %s95
      %s98 = sphi 0, %s97
      %s112 = sphi 0, %s98
      %s116 = sphi 0, %s116
      %s118 = sphi 0, %s116
      %s119 = sphi 0, %s118
      %s133 = sphi 0, %s119
      %s137 = sphi 0, %s137
      %s139 = sphi 0, %s137
      %s140 = sphi 0, %s139
      %s154 = sphi 0, %s140
      %s158 = sphi 0, %s158
      %s160 = sphi 0, %s158
      %s161 = sphi 0, %s160
      %s175 = sphi 0, %s161
      %s179 = sphi 0, %s179
      %s181 = sphi 0, %s179
      %s182 = sphi 0, %s181
      %s196 = sphi 0, %s182
      %s204 = sphi 0, %s206
      %s207 = sphi 0, %s204
      %s208 = sphi 0, %s207
      %s224 = sphi 0, %s208
      %s232 = sphi 0, %s234
      %s235 = sphi 0, %s232
      %s236 = sphi 0, %s235
      %s252 = sphi 0, %s236
    $region4: #{tpu_custom_call.1} parent=1 // loop_header_branch
      %24 = sbr.rel (%p22) target = $region8
    $region5: #{tpu_custom_call.1} parent=1 // loop_body
      %s26 = ssub.s32 %s21, 1
      %s27 = ssub.s32 %s21, 2
      %s34 = sadd.s32 1, %s29
      %p35 = scmp.ge.s32.totalorder %s34, 1
      %s36 = scalar_select %p35, 0, %s34
      %s37 = sadd.s32 1, %s28
      %s38 = scalar_select %p35, %s37, %s28
      %p39 = scmp.ge.s32.totalorder %s38, 2
      %s40 = scalar_select %p39, 0, %s38
      %s41 = ssub.s32 %s28, %s40
      %s42 = ssub.s32 %s29, %s36
      %s43 = sor.u32 %s41, %s42
      %p44 = scmp.eq.s32.totalorder %s43, 0
      %s46 = sadd.s32 %s45, 1
      %s47 = scalar_select %p44, %s45, %s46
      %p50 = pneg %p44
      %p51 = scmp.eq.s32.totalorder %s21, 1
      %p52 = por %p50, %p51
      %p53 = scmp.ne.s32.totalorder %s45, %s48
      %p54 = scmp.eq.s32.totalorder %s21, 0
      %p55 = por %p53, %p54
      %p56 = scmp.ne.s32.totalorder %s45, %s48
      %p57 = scmp.eq.s32.totalorder %s26, 1
      %p58 = por %p56, %p57
      %p59 = scmp.ne.s32.totalorder %s48, %s49
      %p60 = scmp.eq.s32.totalorder %s26, 0
      %p61 = por %p59, %p60
      %p62 = scmp.ne.s32.totalorder %s48, %s49
      %p63 = scmp.eq.s32.totalorder %s27, 1
      %p64 = por %p62, %p63
      %p66 = scmp.ne.s32.totalorder %s49, %s65
      %p67 = scmp.eq.s32.totalorder %s27, 0
      %p68 = por %p66, %p67
      %s69 = ssub.s32 %s28, %s40
      %p70 = scmp.eq.s32.totalorder %s69, 0
      %s72 = sadd.s32 %s71, 1
      %s73 = scalar_select %p70, %s71, %s72
      %p76 = pneg %p70
      %p77 = scmp.eq.s32.totalorder %s21, 1
      %p78 = por %p76, %p77
      %p79 = scmp.ne.s32.totalorder %s71, %s74
      %p80 = scmp.eq.s32.totalorder %s21, 0
      %p81 = por %p79, %p80
      %p82 = scmp.ne.s32.totalorder %s71, %s74
      %p83 = scmp.eq.s32.totalorder %s26, 1
      %p84 = por %p82, %p83
      %p85 = scmp.ne.s32.totalorder %s74, %s75
      %p86 = scmp.eq.s32.totalorder %s26, 0
      %p87 = por %p85, %p86
      %p88 = scmp.ne.s32.totalorder %s74, %s75
      %p89 = scmp.eq.s32.totalorder %s27, 1
      %p90 = por %p88, %p89
      %p92 = scmp.ne.s32.totalorder %s75, %s91
      %p93 = scmp.eq.s32.totalorder %s27, 0
      %p94 = por %p92, %p93
      %s96 = sadd.s32 %s95, 1
      %p99 = scmp.eq.s32.totalorder %s21, 1
      %p100 = scmp.ne.s32.totalorder %s95, %s97
      %p101 = scmp.eq.s32.totalorder %s21, 0
      %p102 = por %p100, %p101
      %p103 = scmp.ne.s32.totalorder %s95, %s97
      %p104 = scmp.eq.s32.totalorder %s26, 1
      %p105 = por %p103, %p104
      %p106 = scmp.ne.s32.totalorder %s97, %s98
      %p107 = scmp.eq.s32.totalorder %s26, 0
      %p108 = por %p106, %p107
      %p109 = scmp.ne.s32.totalorder %s97, %s98
      %p110 = scmp.eq.s32.totalorder %s27, 1
      %p111 = por %p109, %p110
      %p113 = scmp.ne.s32.totalorder %s98, %s112
      %p114 = scmp.eq.s32.totalorder %s27, 0
      %p115 = por %p113, %p114
      %s117 = sadd.s32 %s116, 1
      %p120 = scmp.eq.s32.totalorder %s21, 1
      %p121 = scmp.ne.s32.totalorder %s116, %s118
      %p122 = scmp.eq.s32.totalorder %s21, 0
      %p123 = por %p121, %p122
      %p124 = scmp.ne.s32.totalorder %s116, %s118
      %p125 = scmp.eq.s32.totalorder %s26, 1
      %p126 = por %p124, %p125
      %p127 = scmp.ne.s32.totalorder %s118, %s119
      %p128 = scmp.eq.s32.totalorder %s26, 0
      %p129 = por %p127, %p128
      %p130 = scmp.ne.s32.totalorder %s118, %s119
      %p131 = scmp.eq.s32.totalorder %s27, 1
      %p132 = por %p130, %p131
      %p134 = scmp.ne.s32.totalorder %s119, %s133
      %p135 = scmp.eq.s32.totalorder %s27, 0
      %p136 = por %p134, %p135
      %s138 = sadd.s32 %s137, 1
      %p141 = scmp.eq.s32.totalorder %s21, 1
      %p142 = scmp.ne.s32.totalorder %s137, %s139
      %p143 = scmp.eq.s32.totalorder %s21, 0
      %p144 = por %p142, %p143
      %p145 = scmp.ne.s32.totalorder %s137, %s139
      %p146 = scmp.eq.s32.totalorder %s26, 1
      %p147 = por %p145, %p146
      %p148 = scmp.ne.s32.totalorder %s139, %s140
      %p149 = scmp.eq.s32.totalorder %s26, 0
      %p150 = por %p148, %p149
      %p151 = scmp.ne.s32.totalorder %s139, %s140
      %p152 = scmp.eq.s32.totalorder %s27, 1
      %p153 = por %p151, %p152
      %p155 = scmp.ne.s32.totalorder %s140, %s154
      %p156 = scmp.eq.s32.totalorder %s27, 0
      %p157 = por %p155, %p156
      %s159 = sadd.s32 %s158, 1
      %p162 = scmp.eq.s32.totalorder %s21, 1
      %p163 = scmp.ne.s32.totalorder %s158, %s160
      %p164 = scmp.eq.s32.totalorder %s21, 0
      %p165 = por %p163, %p164
      %p166 = scmp.ne.s32.totalorder %s158, %s160
      %p167 = scmp.eq.s32.totalorder %s26, 1
      %p168 = por %p166, %p167
      %p169 = scmp.ne.s32.totalorder %s160, %s161
      %p170 = scmp.eq.s32.totalorder %s26, 0
      %p171 = por %p169, %p170
      %p172 = scmp.ne.s32.totalorder %s160, %s161
      %p173 = scmp.eq.s32.totalorder %s27, 1
      %p174 = por %p172, %p173
      %p176 = scmp.ne.s32.totalorder %s161, %s175
      %p177 = scmp.eq.s32.totalorder %s27, 0
      %p178 = por %p176, %p177
      %s180 = sadd.s32 %s179, 1
      %p183 = scmp.eq.s32.totalorder %s21, 1
      %p184 = scmp.ne.s32.totalorder %s179, %s181
      %p185 = scmp.eq.s32.totalorder %s21, 0
      %p186 = por %p184, %p185
      %p187 = scmp.ne.s32.totalorder %s179, %s181
      %p188 = scmp.eq.s32.totalorder %s26, 1
      %p189 = por %p187, %p188
      %p190 = scmp.ne.s32.totalorder %s181, %s182
      %p191 = scmp.eq.s32.totalorder %s26, 0
      %p192 = por %p190, %p191
      %p193 = scmp.ne.s32.totalorder %s181, %s182
      %p194 = scmp.eq.s32.totalorder %s27, 1
      %p195 = por %p193, %p194
      %p197 = scmp.ne.s32.totalorder %s182, %s196
      %p198 = scmp.eq.s32.totalorder %s27, 0
      %p199 = por %p197, %p198
      %s200 = ssub.s32 %s28, %s40
      %s201 = ssub.s32 %s29, %s36
      %s202 = sor.u32 %s200, %s201
      %p203 = scmp.eq.s32.totalorder %s202, 0
      %s205 = sadd.s32 %s204, 1
      %s206 = scalar_select %p203, %s204, %s205
      %p209 = pneg %p203
      %p210 = scmp.eq.s32.totalorder %s21, 1
      %p211 = por %p209, %p210
      %p212 = scmp.ne.s32.totalorder %s204, %s207
      %p213 = scmp.eq.s32.totalorder %s21, 0
      %p214 = por %p212, %p213
      %p215 = scmp.ne.s32.totalorder %s204, %s207
      %p216 = scmp.eq.s32.totalorder %s26, 1
      %p217 = por %p215, %p216
      %p218 = scmp.ne.s32.totalorder %s207, %s208
      %p219 = scmp.eq.s32.totalorder %s26, 0
      %p220 = por %p218, %p219
      %p221 = scmp.ne.s32.totalorder %s207, %s208
      %p222 = scmp.eq.s32.totalorder %s27, 1
      %p223 = por %p221, %p222
      %p225 = scmp.ne.s32.totalorder %s208, %s224
      %p226 = scmp.eq.s32.totalorder %s27, 0
      %p227 = por %p225, %p226
      %s228 = ssub.s32 %s28, %s40
      %s229 = ssub.s32 %s29, %s36
      %s230 = sor.u32 %s228, %s229
      %p231 = scmp.eq.s32.totalorder %s230, 0
      %s233 = sadd.s32 %s232, 1
      %s234 = scalar_select %p231, %s232, %s233
      %p237 = pneg %p231
      %p238 = scmp.eq.s32.totalorder %s21, 1
      %p239 = por %p237, %p238
      %p240 = scmp.ne.s32.totalorder %s232, %s235
      %p241 = scmp.eq.s32.totalorder %s21, 0
      %p242 = por %p240, %p241
      %p243 = scmp.ne.s32.totalorder %s232, %s235
      %p244 = scmp.eq.s32.totalorder %s26, 1
      %p245 = por %p243, %p244
      %p246 = scmp.ne.s32.totalorder %s235, %s236
      %p247 = scmp.eq.s32.totalorder %s26, 0
      %p248 = por %p246, %p247
      %p249 = scmp.ne.s32.totalorder %s235, %s236
      %p250 = scmp.eq.s32.totalorder %s27, 1
      %p251 = por %p249, %p250
      %p253 = scmp.ne.s32.totalorder %s236, %s252
      %p254 = scmp.eq.s32.totalorder %s27, 0
      %p255 = por %p253, %p254
      %p256 = scmp.le.s32.totalorder 1, %s21
      %p257 = scmp.lt.s32.totalorder %s21, 3
      %p258 = pnand %p256, %p257
      %p259 = pneg %p258
      // Predicated region
      $region9: #{tpu_custom_call.1} parent=5 // pred_check
        _
      $region10: #{tpu_custom_call.1} parent=5 // pred_check_branch
        %261 = sbr.rel (%p258) target = $region12
      $region11: #{tpu_custom_call.1} parent=5 // pred_region
        %s262 = ssub.s32 %s21, 1
        // Predicated region
        $region13: #{tpu_custom_call.1} parent=11 // pred_check
          %p263 = pneg %p108
        $region14: #{tpu_custom_call.1} parent=11 // pred_check_branch
          %265 = sbr.rel (%p263) target = $region16
        $region15: #{tpu_custom_call.1} parent=11 // pred_region
          _
        $region16: #{tpu_custom_call.1} parent=11 // pred_fallthru
          _
        // Predicated region
        $region17: #{tpu_custom_call.1} parent=11 // pred_check
          %p266 = pneg %p129
        $region18: #{tpu_custom_call.1} parent=11 // pred_check_branch
          %268 = sbr.rel (%p266) target = $region20
        $region19: #{tpu_custom_call.1} parent=11 // pred_region
          _
        $region20: #{tpu_custom_call.1} parent=11 // pred_fallthru
          _
        // Predicated region
        $region21: #{tpu_custom_call.1} parent=11 // pred_check
          %p269 = pneg %p150
        $region22: #{tpu_custom_call.1} parent=11 // pred_check_branch
          %271 = sbr.rel (%p269) target = $region24
        $region23: #{tpu_custom_call.1} parent=11 // pred_region
          _
        $region24: #{tpu_custom_call.1} parent=11 // pred_fallthru
          _
        // Predicated region
        $region25: #{tpu_custom_call.1} parent=11 // pred_check
          %p272 = pneg %p171
        $region26: #{tpu_custom_call.1} parent=11 // pred_check_branch
          %274 = sbr.rel (%p272) target = $region28
        $region27: #{tpu_custom_call.1} parent=11 // pred_region
          _
        $region28: #{tpu_custom_call.1} parent=11 // pred_fallthru
          _
        // Predicated region
        $region29: #{tpu_custom_call.1} parent=11 // pred_check
          %p275 = pneg %p192
        $region30: #{tpu_custom_call.1} parent=11 // pred_check_branch
          %277 = sbr.rel (%p275) target = $region32
        $region31: #{tpu_custom_call.1} parent=11 // pred_region
          _
        $region32: #{tpu_custom_call.1} parent=11 // pred_fallthru
          _
      $region12: #{tpu_custom_call.1} parent=5 // pred_fallthru
        _
      %p278 = scmp.lt.s32.totalorder %s21, 2
      // Predicated region
      $region33: #{tpu_custom_call.1} parent=5 // pred_check
        %p279 = pneg %p278
      $region34: #{tpu_custom_call.1} parent=5 // pred_check_branch
        %281 = sbr.rel (%p279) target = $region36
      $region35: #{tpu_custom_call.1} parent=5 // pred_region
        // Predicated region
        $region37: #{tpu_custom_call.1} parent=35 // pred_check
          %p282 = pneg %p55
        $region38: #{tpu_custom_call.1} parent=35 // pred_check_branch
          %284 = sbr.rel (%p282) target = $region40
        $region39: #{tpu_custom_call.1} parent=35 // pred_region
          %p285 = scmp.lt.s32.totalorder %s28, 1
          %s286 = scalar_select %p285, %s28, 1
          %p287 = scmp.lt.s32.totalorder %s29, 0
          %s288 = scalar_select %p287, %s29, 0
          %s289 = sadd.s32 %s288, %s286
          %s290 = smul.addr %s289, 4
          %s291 = scalar_lea.vmem %s0, %s290
        $region40: #{tpu_custom_call.1} parent=35 // pred_fallthru
          _
        // Predicated region
        $region41: #{tpu_custom_call.1} parent=35 // pred_check
          %p292 = pneg %p81
        $region42: #{tpu_custom_call.1} parent=35 // pred_check_branch
          %294 = sbr.rel (%p292) target = $region44
        $region43: #{tpu_custom_call.1} parent=35 // pred_region
          %p295 = scmp.lt.s32.totalorder %s28, 1
          %s296 = scalar_select %p295, %s28, 1
          %s297 = smul.addr %s296, 2
          %s298 = smul.addr %s297, 4
          %s299 = scalar_lea.vmem %s1, %s298
        $region44: #{tpu_custom_call.1} parent=35 // pred_fallthru
          _
      $region36: #{tpu_custom_call.1} parent=5 // pred_fallthru
        _
      %p300 = scmp.le.s32.totalorder 1, %s21
      %p301 = scmp.lt.s32.totalorder %s21, 3
      %p302 = pnand %p300, %p301
      %p303 = pneg %p302
      // Predicated region
      $region45: #{tpu_custom_call.1} parent=5 // pred_check
        _
      $region46: #{tpu_custom_call.1} parent=5 // pred_check_branch
        %305 = sbr.rel (%p302) target = $region48
      $region47: #{tpu_custom_call.1} parent=5 // pred_region
        %s306 = ssub.s32 %s21, 1
        %p307 = scmp.lt.s32.totalorder %s30, 1
        %s308 = scalar_select %p307, %s30, 1
        %p309 = scmp.lt.s32.totalorder %s31, 0
        %s310 = scalar_select %p309, %s31, 0
        %s311 = sadd.s32 %s310, %s308
        %s312 = smul.addr %s311, 4
        %s313 = scalar_lea.vmem %s0, %s312
        %p314 = pneg %p61
        %p315 = pneg %p58
        %p316 = scmp.lt.s32.totalorder %s30, 1
        %s317 = scalar_select %p316, %s30, 1
        %s318 = smul.addr %s317, 2
        %s319 = smul.addr %s318, 4
        %s320 = scalar_lea.vmem %s1, %s319
        %p321 = pneg %p87
        %p322 = pneg %p84
        %p323 = pneg %p108
        %p324 = pneg %p105
        %p325 = pneg %p129
        %p326 = pneg %p126
        %p327 = pneg %p150
        %p328 = pneg %p147
        %p329 = pneg %p171
        %p330 = pneg %p168
        %p331 = pneg %p192
        %p332 = pneg %p189
        %p333 = pneg %p220
        %p334 = pneg %p217
        %s335 = sand.u32 %s207, 1
        %s336 = scalar_lea.sflag [#allocation5], %s335
        %s337 = sand.u32 %s207, 1
        %s338 = smul.addr %s337, 8
        %s339 = scalar_lea.vmem [#allocation4], %s338
        %p340 = pneg %p248
        %p341 = pneg %p245
        %s342 = sand.u32 %s235, 1
        %s343 = scalar_lea.sflag [#allocation7], %s342
        %s344 = sand.u32 %s235, 1
        %s345 = smul.addr %s344, 4
        %s346 = scalar_lea.vmem [#allocation6], %s345
        %p347 = scmp.lt.s32.totalorder %s30, 1
        %s348 = scalar_select %p347, %s30, 1
        %p349 = scmp.lt.s32.totalorder %s31, 0
        %s350 = scalar_select %p349, %s31, 0
        %s351 = sadd.s32 %s350, %s348
        %s352 = smul.addr %s351, 4
        %s353 = scalar_lea.vmem %s0, %s352
        %p354 = scmp.lt.s32.totalorder %s30, 1
        %s355 = scalar_select %p354, %s30, 1
        %s356 = smul.addr %s355, 2
        %s357 = smul.addr %s356, 4
        %s358 = scalar_lea.vmem %s1, %s357
        %p360 = scmp.eq.s32.totalorder %s31, 0
        // Predicated region
        $region49: #{tpu_custom_call.1} parent=47 // pred_check
          %p361 = pneg %p360
        $region50: #{tpu_custom_call.1} parent=47 // pred_check_branch
          %363 = sbr.rel (%p361) target = $region52
        $region51: #{tpu_custom_call.1} parent=47 // pred_region
          %v364 = vld [vmem:[%s358] sm:$0xf]
          %v365 = vld [vmem:[%s358 + $0x4] sm:$0xf]
          %v366 = vld [vmem:[%s2] sm:$0xf]
          %v367 = vld [vmem:[%s2 + $0x4] sm:$0xf]
          %v368 = vld [vmem:[%s2 + $0x8] sm:$0xf]
          %v369 = vld [vmem:[%s2 + $0xc] sm:$0xf]
          %v372 = vunpack.c.l.b16 %v364
          %v373 = vunpack.c.l.b16 %v365
          %v374 = vpack.c.b16 %v373, %v372
          %v379 = vunpack.c.l.b16 %v366
          %v380 = vunpack.c.l.b16 %v367
          %v381 = vunpack.c.l.b16 %v368
          %v382 = vunpack.c.l.b16 %v369
          %v383 = vpack.c.b16 %v380, %v379
          %v384 = vpack.c.b16 %v382, %v381
          %vm385 = vcmask 261120
          %v387 = vsel %vm385, %v374, 0
          %v390 = vsel %vm385, %v383, 0
          %v393 = vsel %vm385, %v384, 0
          %395 = vmatprep.subr.bf16.mxu0 0
          %396 = vmatpush1.bf16.xpose.msra.mxu0 %v390
          %397 = vmatprep.subr.bf16.mxu0 0
          %398 = vmatpush1.bf16.xpose.msra.mxu0 %v393
          %399 = vmatprep.subr.bf16.mxu0 0
          %400 = vmatpush1.bf16.xpose.msra.mxu0 0
          %401 = vmatprep.subr.bf16.mxu0 0
          %402 = vmatpush1.bf16.xpose.msra.mxu0 0
          %403 = vmatprep.subr.bf16.mxu0 0
          %404 = vmatpush1.bf16.xpose.msra.mxu0 0
          %405 = vmatprep.subr.bf16.mxu0 0
          %406 = vmatpush1.bf16.xpose.msra.mxu0 0
          %407 = vmatprep.subr.bf16.mxu0 0
          %408 = vmatpush1.bf16.xpose.msra.mxu0 0
          %409 = vmatprep.subr.bf16.mxu0 0
          %410 = vmatpush1.bf16.xpose.msra.mxu0 0
          %411 = vmatprep.subr.bf16.mxu0 0
          %412 = vmatpush1.bf16.xpose.msra.mxu0 0
          %413 = vmatprep.subr.bf16.mxu0 0
          %414 = vmatpush1.bf16.xpose.msra.mxu0 0
          %415 = vmatprep.subr.bf16.mxu0 0
          %416 = vmatpush1.bf16.xpose.msra.mxu0 0
          %417 = vmatprep.subr.bf16.mxu0 0
          %418 = vmatpush1.bf16.xpose.msra.mxu0 0
          %419 = vmatprep.subr.bf16.mxu0 0
          %420 = vmatpush1.bf16.xpose.msra.mxu0 0
          %421 = vmatprep.subr.bf16.mxu0 0
          %422 = vmatpush1.bf16.xpose.msra.mxu0 0
          %423 = vmatprep.subr.bf16.mxu0 0
          %424 = vmatpush1.bf16.xpose.msra.mxu0 0
          %425 = vmatprep.subr.bf16.mxu0 0
          %426 = vmatpush1.bf16.xpose.msra.mxu0 0
          %427 = vmatprep.mubr.bf16.mxu0 0
          %428 = vmatmul.mubr.bf16.gmra.mrb[0].mxu0 %v387
          %v429 = vpop.f32.mrb[0].mxu0
          %v430 = vadd.f32 0.0, %v429
          %v431 = vpop.f32.mrb[0].mxu0
          %v432 = vpop.f32.mrb[0].mxu0
          %v433 = vadd.f32 0.0, %v432
          %v434 = vpop.f32.mrb[0].mxu0
          %435 = vdwg.mxu0
          %v436 = vld [vmem:[%s3] sm:$0xf]
          %v437 = vld [vmem:[%s3 + $0x4] sm:$0xf]
          %v438 = vld [vmem:[%s3 + $0x8] sm:$0xf]
          %v439 = vld [vmem:[%s3 + $0xc] sm:$0xf]
          %v444 = vunpack.c.l.b16 %v436
          %v445 = vunpack.c.l.b16 %v437
          %v446 = vunpack.c.l.b16 %v438
          %v447 = vunpack.c.l.b16 %v439
          %v448 = vpack.c.b16 %v445, %v444
          %v449 = vpack.c.b16 %v447, %v446
          %v451 = vsel %vm385, %v448, 0
          %v454 = vsel %vm385, %v449, 0
          %456 = vmatprep.subr.bf16.mxu0 0
          %457 = vmatpush1.bf16.xpose.msra.mxu0 %v451
          %458 = vmatprep.subr.bf16.mxu0 0
          %459 = vmatpush1.bf16.xpose.msra.mxu0 %v454
          %460 = vmatprep.subr.bf16.mxu0 0
          %461 = vmatpush1.bf16.xpose.msra.mxu0 0
          %462 = vmatprep.subr.bf16.mxu0 0
          %463 = vmatpush1.bf16.xpose.msra.mxu0 0
          %464 = vmatprep.subr.bf16.mxu0 0
          %465 = vmatpush1.bf16.xpose.msra.mxu0 0
          %466 = vmatprep.subr.bf16.mxu0 0
          %467 = vmatpush1.bf16.xpose.msra.mxu0 0
          %468 = vmatprep.subr.bf16.mxu0 0
          %469 = vmatpush1.bf16.xpose.msra.mxu0 0
          %470 = vmatprep.subr.bf16.mxu0 0
          %471 = vmatpush1.bf16.xpose.msra.mxu0 0
          %472 = vmatprep.subr.bf16.mxu0 0
          %473 = vmatpush1.bf16.xpose.msra.mxu0 0
          %474 = vmatprep.subr.bf16.mxu0 0
          %475 = vmatpush1.bf16.xpose.msra.mxu0 0
          %476 = vmatprep.subr.bf16.mxu0 0
          %477 = vmatpush1.bf16.xpose.msra.mxu0 0
          %478 = vmatprep.subr.bf16.mxu0 0
          %479 = vmatpush1.bf16.xpose.msra.mxu0 0
          %480 = vmatprep.subr.bf16.mxu0 0
          %481 = vmatpush1.bf16.xpose.msra.mxu0 0
          %482 = vmatprep.subr.bf16.mxu0 0
          %483 = vmatpush1.bf16.xpose.msra.mxu0 0
          %484 = vmatprep.subr.bf16.mxu0 0
          %485 = vmatpush1.bf16.xpose.msra.mxu0 0
          %486 = vmatprep.subr.bf16.mxu0 0
          %487 = vmatpush1.bf16.xpose.msra.mxu0 0
          %488 = vmatprep.mubr.bf16.mxu0 0
          %489 = vmatmul.mubr.bf16.gmra.mrb[0].mxu0 %v387
          %v490 = vpop.f32.mrb[0].mxu0
          %v491 = vadd.f32 0.0, %v490
          %v492 = vpop.f32.mrb[0].mxu0
          %v493 = vpop.f32.mrb[0].mxu0
          %v494 = vadd.f32 0.0, %v493
          %v495 = vpop.f32.mrb[0].mxu0
          %496 = vdwg.mxu0
          %v497 = vpack.c.bf16 %v433, %v430
          %vm498 = vcmask 31744
          %499 = vst.msk [vmem:[#allocation2] sm:$0xff] %vm498, %v497
          %v500 = vpack.c.bf16 %v494, %v491
          %501 = vst.msk [vmem:[#allocation3] sm:$0xff] %vm498, %v500
          %503 = vrot.lane.b32.xlu0 %v497, 124
          %v504 = vpop.permute.xlu0 %503
          %s506 = scalar_lea.vmem [#allocation2], 8
          %507 = vst.msk [vmem:[%s506] sm:$0xff] %vm498, %v504
          %509 = vrot.lane.b32.xlu0 %v500, 124
          %v510 = vpop.permute.xlu0 %509
          %s512 = scalar_lea.vmem [#allocation3], 8
          %513 = vst.msk [vmem:[%s512] sm:$0xff] %vm498, %v510
          %514 = vrot.lane.b32.xlu0 %v497, 120
          %v515 = vpop.permute.xlu0 %514
          %s517 = scalar_lea.vmem [#allocation2], 16
          %518 = vst.msk [vmem:[%s517] sm:$0xff] %vm498, %v515
          %519 = vrot.lane.b32.xlu0 %v500, 120
          %v520 = vpop.permute.xlu0 %519
          %s522 = scalar_lea.vmem [#allocation3], 16
          %523 = vst.msk [vmem:[%s522] sm:$0xff] %vm498, %v520
          %524 = vrot.lane.b32.xlu0 %v497, 116
          %v525 = vpop.permute.xlu0 %524
          %s527 = scalar_lea.vmem [#allocation2], 24
          %528 = vst.msk [vmem:[%s527] sm:$0xff] %vm498, %v525
          %529 = vrot.lane.b32.xlu0 %v500, 116
          %v530 = vpop.permute.xlu0 %529
          %s532 = scalar_lea.vmem [#allocation3], 24
          %533 = vst.msk [vmem:[%s532] sm:$0xff] %vm498, %v530
          %534 = vrot.lane.b32.xlu0 %v497, 112
          %v535 = vpop.permute.xlu0 %534
          %s537 = scalar_lea.vmem [#allocation2], 32
          %538 = vst.msk [vmem:[%s537] sm:$0xff] %vm498, %v535
          %539 = vrot.lane.b32.xlu0 %v500, 112
          %v540 = vpop.permute.xlu0 %539
          %s542 = scalar_lea.vmem [#allocation3], 32
          %543 = vst.msk [vmem:[%s542] sm:$0xff] %vm498, %v540
          %544 = vrot.lane.b32.xlu0 %v497, 108
          %v545 = vpop.permute.xlu0 %544
          %s547 = scalar_lea.vmem [#allocation2], 40
          %548 = vst.msk [vmem:[%s547] sm:$0xff] %vm498, %v545
          %549 = vrot.lane.b32.xlu0 %v500, 108
          %v550 = vpop.permute.xlu0 %549
          %s552 = scalar_lea.vmem [#allocation3], 40
          %553 = vst.msk [vmem:[%s552] sm:$0xff] %vm498, %v550
          %554 = vrot.lane.b32.xlu0 %v497, 104
          %v555 = vpop.permute.xlu0 %554
          %s557 = scalar_lea.vmem [#allocation2], 48
          %558 = vst.msk [vmem:[%s557] sm:$0xff] %vm498, %v555
          %559 = vrot.lane.b32.xlu0 %v500, 104
          %v560 = vpop.permute.xlu0 %559
          %s562 = scalar_lea.vmem [#allocation3], 48
          %563 = vst.msk [vmem:[%s562] sm:$0xff] %vm498, %v560
          %564 = vrot.lane.b32.xlu0 %v497, 100
          %v565 = vpop.permute.xlu0 %564
          %s567 = scalar_lea.vmem [#allocation2], 56
          %568 = vst.msk [vmem:[%s567] sm:$0xff] %vm498, %v565
          %569 = vrot.lane.b32.xlu0 %v500, 100
          %v570 = vpop.permute.xlu0 %569
          %s572 = scalar_lea.vmem [#allocation3], 56
          %573 = vst.msk [vmem:[%s572] sm:$0xff] %vm498, %v570
        $region52: #{tpu_custom_call.1} parent=47 // pred_fallthru
          _
        %v574 = vld [vmem:[%s353] sm:$0xf]
        %v575 = vld [vmem:[%s4] sm:$0x3]
        %v576 = vld [vmem:[%s4 + $0x2] sm:$0x3]
        %v577 = vld [vmem:[%s4 + $0x4] sm:$0x3]
        %v578 = vld [vmem:[%s4 + $0x6] sm:$0x3]
        %v579 = vld [vmem:[%s4 + $0x8] sm:$0x3]
        %v580 = vld [vmem:[%s4 + $0xa] sm:$0x3]
        %v581 = vld [vmem:[%s4 + $0xc] sm:$0x3]
        %v582 = vld [vmem:[%s4 + $0xe] sm:$0x3]
        %vm583 = vcmask 261120
        %v585 = vsel %vm583, %v574, 0
        %v588 = vsel %vm583, %v575, 0
        %590 = vmatprep.subr.bf16.mxu0 0
        %591 = vmatpush1.bf16.xpose.msra.mxu0 %v588
        %592 = vmatprep.subr.bf16.mxu0 0
        %593 = vmatpush1.bf16.xpose.msra.mxu0 0
        %594 = vmatprep.subr.bf16.mxu0 0
        %595 = vmatpush1.bf16.xpose.msra.mxu0 0
        %596 = vmatprep.subr.bf16.mxu0 0
        %597 = vmatpush1.bf16.xpose.msra.mxu0 0
        %598 = vmatprep.subr.bf16.mxu0 0
        %599 = vmatpush1.bf16.xpose.msra.mxu0 0
        %600 = vmatprep.subr.bf16.mxu0 0
        %601 = vmatpush1.bf16.xpose.msra.mxu0 0
        %602 = vmatprep.subr.bf16.mxu0 0
        %603 = vmatpush1.bf16.xpose.msra.mxu0 0
        %604 = vmatprep.subr.bf16.mxu0 0
        %605 = vmatpush1.bf16.xpose.msra.mxu0 0
        %606 = vmatprep.subr.bf16.mxu0 0
        %607 = vmatpush1.bf16.xpose.msra.mxu0 0
        %608 = vmatprep.subr.bf16.mxu0 0
        %609 = vmatpush1.bf16.xpose.msra.mxu0 0
        %610 = vmatprep.subr.bf16.mxu0 0
        %611 = vmatpush1.bf16.xpose.msra.mxu0 0
        %612 = vmatprep.subr.bf16.mxu0 0
        %613 = vmatpush1.bf16.xpose.msra.mxu0 0
        %614 = vmatprep.subr.bf16.mxu0 0
        %615 = vmatpush1.bf16.xpose.msra.mxu0 0
        %616 = vmatprep.subr.bf16.mxu0 0
        %617 = vmatpush1.bf16.xpose.msra.mxu0 0
        %618 = vmatprep.subr.bf16.mxu0 0
        %619 = vmatpush1.bf16.xpose.msra.mxu0 0
        %620 = vmatprep.subr.bf16.mxu0 0
        %621 = vmatpush1.bf16.xpose.msra.mxu0 0
        %622 = vmatprep.mubr.bf16.mxu0 0
        %623 = vmatmul.mubr.bf16.gmra.mrb[0].mxu0 %v585
        %v624 = vpop.f32.mrb[0].mxu0
        %v625 = vadd.f32 0.0, %v624
        %v626 = vpop.f32.mrb[0].mxu0
        %v627 = vpop.f32.mrb[0].mxu0
        %v628 = vpop.f32.mrb[0].mxu0
        %629 = vdwg.mxu0
        %v631 = vsel %vm583, %v576, 0
        %633 = vmatprep.subr.bf16.mxu0 0
        %634 = vmatpush1.bf16.xpose.msra.mxu0 %v631
        %635 = vmatprep.subr.bf16.mxu0 0
        %636 = vmatpush1.bf16.xpose.msra.mxu0 0
        %637 = vmatprep.subr.bf16.mxu0 0
        %638 = vmatpush1.bf16.xpose.msra.mxu0 0
        %639 = vmatprep.subr.bf16.mxu0 0
        %640 = vmatpush1.bf16.xpose.msra.mxu0 0
        %641 = vmatprep.subr.bf16.mxu0 0
        %642 = vmatpush1.bf16.xpose.msra.mxu0 0
        %643 = vmatprep.subr.bf16.mxu0 0
        %644 = vmatpush1.bf16.xpose.msra.mxu0 0
        %645 = vmatprep.subr.bf16.mxu0 0
        %646 = vmatpush1.bf16.xpose.msra.mxu0 0
        %647 = vmatprep.subr.bf16.mxu0 0
        %648 = vmatpush1.bf16.xpose.msra.mxu0 0
        %649 = vmatprep.subr.bf16.mxu0 0
        %650 = vmatpush1.bf16.xpose.msra.mxu0 0
        %651 = vmatprep.subr.bf16.mxu0 0
        %652 = vmatpush1.bf16.xpose.msra.mxu0 0
        %653 = vmatprep.subr.bf16.mxu0 0
        %654 = vmatpush1.bf16.xpose.msra.mxu0 0
        %655 = vmatprep.subr.bf16.mxu0 0
        %656 = vmatpush1.bf16.xpose.msra.mxu0 0
        %657 = vmatprep.subr.bf16.mxu0 0
        %658 = vmatpush1.bf16.xpose.msra.mxu0 0
        %659 = vmatprep.subr.bf16.mxu0 0
        %660 = vmatpush1.bf16.xpose.msra.mxu0 0
        %661 = vmatprep.subr.bf16.mxu0 0
        %662 = vmatpush1.bf16.xpose.msra.mxu0 0
        %663 = vmatprep.subr.bf16.mxu0 0
        %664 = vmatpush1.bf16.xpose.msra.mxu0 0
        %665 = vmatprep.mubr.bf16.mxu0 0
        %666 = vmatmul.mubr.bf16.gmra.mrb[0].mxu0 %v585
        %v667 = vpop.f32.mrb[0].mxu0
        %v668 = vadd.f32 0.0, %v667
        %v669 = vpop.f32.mrb[0].mxu0
        %v670 = vpop.f32.mrb[0].mxu0
        %v671 = vpop.f32.mrb[0].mxu0
        %672 = vdwg.mxu0
        %v674 = vsel %vm583, %v577, 0
        %676 = vmatprep.subr.bf16.mxu0 0
        %677 = vmatpush1.bf16.xpose.msra.mxu0 %v674
        %678 = vmatprep.subr.bf16.mxu0 0
        %679 = vmatpush1.bf16.xpose.msra.mxu0 0
        %680 = vmatprep.subr.bf16.mxu0 0
        %681 = vmatpush1.bf16.xpose.msra.mxu0 0
        %682 = vmatprep.subr.bf16.mxu0 0
        %683 = vmatpush1.bf16.xpose.msra.mxu0 0
        %684 = vmatprep.subr.bf16.mxu0 0
        %685 = vmatpush1.bf16.xpose.msra.mxu0 0
        %686 = vmatprep.subr.bf16.mxu0 0
        %687 = vmatpush1.bf16.xpose.msra.mxu0 0
        %688 = vmatprep.subr.bf16.mxu0 0
        %689 = vmatpush1.bf16.xpose.msra.mxu0 0
        %690 = vmatprep.subr.bf16.mxu0 0
        %691 = vmatpush1.bf16.xpose.msra.mxu0 0
        %692 = vmatprep.subr.bf16.mxu0 0
        %693 = vmatpush1.bf16.xpose.msra.mxu0 0
        %694 = vmatprep.subr.bf16.mxu0 0
        %695 = vmatpush1.bf16.xpose.msra.mxu0 0
        %696 = vmatprep.subr.bf16.mxu0 0
        %697 = vmatpush1.bf16.xpose.msra.mxu0 0
        %698 = vmatprep.subr.bf16.mxu0 0
        %699 = vmatpush1.bf16.xpose.msra.mxu0 0
        %700 = vmatprep.subr.bf16.mxu0 0
        %701 = vmatpush1.bf16.xpose.msra.mxu0 0
        %702 = vmatprep.subr.bf16.mxu0 0
        %703 = vmatpush1.bf16.xpose.msra.mxu0 0
        %704 = vmatprep.subr.bf16.mxu0 0
        %705 = vmatpush1.bf16.xpose.msra.mxu0 0
        %706 = vmatprep.subr.bf16.mxu0 0
        %707 = vmatpush1.bf16.xpose.msra.mxu0 0
        %708 = vmatprep.mubr.bf16.mxu0 0
        %709 = vmatmul.mubr.bf16.gmra.mrb[0].mxu0 %v585
        %v710 = vpop.f32.mrb[0].mxu0
        %v711 = vadd.f32 0.0, %v710
        %v712 = vpop.f32.mrb[0].mxu0
        %v713 = vpop.f32.mrb[0].mxu0
        %v714 = vpop.f32.mrb[0].mxu0
        %715 = vdwg.mxu0
        %v717 = vsel %vm583, %v578, 0
        %719 = vmatprep.subr.bf16.mxu0 0
        %720 = vmatpush1.bf16.xpose.msra.mxu0 %v717
        %721 = vmatprep.subr.bf16.mxu0 0
        %722 = vmatpush1.bf16.xpose.msra.mxu0 0
        %723 = vmatprep.subr.bf16.mxu0 0
        %724 = vmatpush1.bf16.xpose.msra.mxu0 0
        %725 = vmatprep.subr.bf16.mxu0 0
        %726 = vmatpush1.bf16.xpose.msra.mxu0 0
        %727 = vmatprep.subr.bf16.mxu0 0
        %728 = vmatpush1.bf16.xpose.msra.mxu0 0
        %729 = vmatprep.subr.bf16.mxu0 0
        %730 = vmatpush1.bf16.xpose.msra.mxu0 0
        %731 = vmatprep.subr.bf16.mxu0 0
        %732 = vmatpush1.bf16.xpose.msra.mxu0 0
        %733 = vmatprep.subr.bf16.mxu0 0
        %734 = vmatpush1.bf16.xpose.msra.mxu0 0
        %735 = vmatprep.subr.bf16.mxu0 0
        %736 = vmatpush1.bf16.xpose.msra.mxu0 0
        %737 = vmatprep.subr.bf16.mxu0 0
        %738 = vmatpush1.bf16.xpose.msra.mxu0 0
        %739 = vmatprep.subr.bf16.mxu0 0
        %740 = vmatpush1.bf16.xpose.msra.mxu0 0
        %741 = vmatprep.subr.bf16.mxu0 0
        %742 = vmatpush1.bf16.xpose.msra.mxu0 0
        %743 = vmatprep.subr.bf16.mxu0 0
        %744 = vmatpush1.bf16.xpose.msra.mxu0 0
        %745 = vmatprep.subr.bf16.mxu0 0
        %746 = vmatpush1.bf16.xpose.msra.mxu0 0
        %747 = vmatprep.subr.bf16.mxu0 0
        %748 = vmatpush1.bf16.xpose.msra.mxu0 0
        %749 = vmatprep.subr.bf16.mxu0 0
        %750 = vmatpush1.bf16.xpose.msra.mxu0 0
        %751 = vmatprep.mubr.bf16.mxu0 0
        %752 = vmatmul.mubr.bf16.gmra.mrb[0].mxu0 %v585
        %v753 = vpop.f32.mrb[0].mxu0
        %v754 = vadd.f32 0.0, %v753
        %v755 = vpop.f32.mrb[0].mxu0
        %v756 = vpop.f32.mrb[0].mxu0
        %v757 = vpop.f32.mrb[0].mxu0
        %758 = vdwg.mxu0
        %v760 = vsel %vm583, %v579, 0
        %762 = vmatprep.subr.bf16.mxu0 0
        %763 = vmatpush1.bf16.xpose.msra.mxu0 %v760
        %764 = vmatprep.subr.bf16.mxu0 0
        %765 = vmatpush1.bf16.xpose.msra.mxu0 0
        %766 = vmatprep.subr.bf16.mxu0 0
        %767 = vmatpush1.bf16.xpose.msra.mxu0 0
        %768 = vmatprep.subr.bf16.mxu0 0
        %769 = vmatpush1.bf16.xpose.msra.mxu0 0
        %770 = vmatprep.subr.bf16.mxu0 0
        %771 = vmatpush1.bf16.xpose.msra.mxu0 0
        %772 = vmatprep.subr.bf16.mxu0 0
        %773 = vmatpush1.bf16.xpose.msra.mxu0 0
        %774 = vmatprep.subr.bf16.mxu0 0
        %775 = vmatpush1.bf16.xpose.msra.mxu0 0
        %776 = vmatprep.subr.bf16.mxu0 0
        %777 = vmatpush1.bf16.xpose.msra.mxu0 0
        %778 = vmatprep.subr.bf16.mxu0 0
        %779 = vmatpush1.bf16.xpose.msra.mxu0 0
        %780 = vmatprep.subr.bf16.mxu0 0
        %781 = vmatpush1.bf16.xpose.msra.mxu0 0
        %782 = vmatprep.subr.bf16.mxu0 0
        %783 = vmatpush1.bf16.xpose.msra.mxu0 0
        %784 = vmatprep.subr.bf16.mxu0 0
        %785 = vmatpush1.bf16.xpose.msra.mxu0 0
        %786 = vmatprep.subr.bf16.mxu0 0
        %787 = vmatpush1.bf16.xpose.msra.mxu0 0
        %788 = vmatprep.subr.bf16.mxu0 0
        %789 = vmatpush1.bf16.xpose.msra.mxu0 0
        %790 = vmatprep.subr.bf16.mxu0 0
        %791 = vmatpush1.bf16.xpose.msra.mxu0 0
        %792 = vmatprep.subr.bf16.mxu0 0
        %793 = vmatpush1.bf16.xpose.msra.mxu0 0
        %794 = vmatprep.mubr.bf16.mxu0 0
        %795 = vmatmul.mubr.bf16.gmra.mrb[0].mxu0 %v585
        %v796 = vpop.f32.mrb[0].mxu0
        %v797 = vadd.f32 0.0, %v796
        %v798 = vpop.f32.mrb[0].mxu0
        %v799 = vpop.f32.mrb[0].mxu0
        %v800 = vpop.f32.mrb[0].mxu0
        %801 = vdwg.mxu0
        %v803 = vsel %vm583, %v580, 0
        %805 = vmatprep.subr.bf16.mxu0 0
        %806 = vmatpush1.bf16.xpose.msra.mxu0 %v803
        %807 = vmatprep.subr.bf16.mxu0 0
        %808 = vmatpush1.bf16.xpose.msra.mxu0 0
        %809 = vmatprep.subr.bf16.mxu0 0
        %810 = vmatpush1.bf16.xpose.msra.mxu0 0
        %811 = vmatprep.subr.bf16.mxu0 0
        %812 = vmatpush1.bf16.xpose.msra.mxu0 0
        %813 = vmatprep.subr.bf16.mxu0 0
        %814 = vmatpush1.bf16.xpose.msra.mxu0 0
        %815 = vmatprep.subr.bf16.mxu0 0
        %816 = vmatpush1.bf16.xpose.msra.mxu0 0
        %817 = vmatprep.subr.bf16.mxu0 0
        %818 = vmatpush1.bf16.xpose.msra.mxu0 0
        %819 = vmatprep.subr.bf16.mxu0 0
        %820 = vmatpush1.bf16.xpose.msra.mxu0 0
        %821 = vmatprep.subr.bf16.mxu0 0
        %822 = vmatpush1.bf16.xpose.msra.mxu0 0
        %823 = vmatprep.subr.bf16.mxu0 0
        %824 = vmatpush1.bf16.xpose.msra.mxu0 0
        %825 = vmatprep.subr.bf16.mxu0 0
        %826 = vmatpush1.bf16.xpose.msra.mxu0 0
        %827 = vmatprep.subr.bf16.mxu0 0
        %828 = vmatpush1.bf16.xpose.msra.mxu0 0
        %829 = vmatprep.subr.bf16.mxu0 0
        %830 = vmatpush1.bf16.xpose.msra.mxu0 0
        %831 = vmatprep.subr.bf16.mxu0 0
        %832 = vmatpush1.bf16.xpose.msra.mxu0 0
        %833 = vmatprep.subr.bf16.mxu0 0
        %834 = vmatpush1.bf16.xpose.msra.mxu0 0
        %835 = vmatprep.subr.bf16.mxu0 0
        %836 = vmatpush1.bf16.xpose.msra.mxu0 0
        %837 = vmatprep.mubr.bf16.mxu0 0
        %838 = vmatmul.mubr.bf16.gmra.mrb[0].mxu0 %v585
        %v839 = vpop.f32.mrb[0].mxu0
        %v840 = vadd.f32 0.0, %v839
        %v841 = vpop.f32.mrb[0].mxu0
        %v842 = vpop.f32.mrb[0].mxu0
        %v843 = vpop.f32.mrb[0].mxu0
        %844 = vdwg.mxu0
        %v846 = vsel %vm583, %v581, 0
        %848 = vmatprep.subr.bf16.mxu0 0
        %849 = vmatpush1.bf16.xpose.msra.mxu0 %v846
        %850 = vmatprep.subr.bf16.mxu0 0
        %851 = vmatpush1.bf16.xpose.msra.mxu0 0
        %852 = vmatprep.subr.bf16.mxu0 0
        %853 = vmatpush1.bf16.xpose.msra.mxu0 0
        %854 = vmatprep.subr.bf16.mxu0 0
        %855 = vmatpush1.bf16.xpose.msra.mxu0 0
        %856 = vmatprep.subr.bf16.mxu0 0
        %857 = vmatpush1.bf16.xpose.msra.mxu0 0
        %858 = vmatprep.subr.bf16.mxu0 0
        %859 = vmatpush1.bf16.xpose.msra.mxu0 0
        %860 = vmatprep.subr.bf16.mxu0 0
        %861 = vmatpush1.bf16.xpose.msra.mxu0 0
        %862 = vmatprep.subr.bf16.mxu0 0
        %863 = vmatpush1.bf16.xpose.msra.mxu0 0
        %864 = vmatprep.subr.bf16.mxu0 0
        %865 = vmatpush1.bf16.xpose.msra.mxu0 0
        %866 = vmatprep.subr.bf16.mxu0 0
        %867 = vmatpush1.bf16.xpose.msra.mxu0 0
        %868 = vmatprep.subr.bf16.mxu0 0
        %869 = vmatpush1.bf16.xpose.msra.mxu0 0
        %870 = vmatprep.subr.bf16.mxu0 0
        %871 = vmatpush1.bf16.xpose.msra.mxu0 0
        %872 = vmatprep.subr.bf16.mxu0 0
        %873 = vmatpush1.bf16.xpose.msra.mxu0 0
        %874 = vmatprep.subr.bf16.mxu0 0
        %875 = vmatpush1.bf16.xpose.msra.mxu0 0
        %876 = vmatprep.subr.bf16.mxu0 0
        %877 = vmatpush1.bf16.xpose.msra.mxu0 0
        %878 = vmatprep.subr.bf16.mxu0 0
        %879 = vmatpush1.bf16.xpose.msra.mxu0 0
        %880 = vmatprep.mubr.bf16.mxu0 0
        %881 = vmatmul.mubr.bf16.gmra.mrb[0].mxu0 %v585
        %v882 = vpop.f32.mrb[0].mxu0
        %v883 = vadd.f32 0.0, %v882
        %v884 = vpop.f32.mrb[0].mxu0
        %v885 = vpop.f32.mrb[0].mxu0
        %v886 = vpop.f32.mrb[0].mxu0
        %887 = vdwg.mxu0
        %v889 = vsel %vm583, %v582, 0
        %891 = vmatprep.subr.bf16.mxu0 0
        %892 = vmatpush1.bf16.xpose.msra.mxu0 %v889
        %893 = vmatprep.subr.bf16.mxu0 0
        %894 = vmatpush1.bf16.xpose.msra.mxu0 0
        %895 = vmatprep.subr.bf16.mxu0 0
        %896 = vmatpush1.bf16.xpose.msra.mxu0 0
        %897 = vmatprep.subr.bf16.mxu0 0
        %898 = vmatpush1.bf16.xpose.msra.mxu0 0
        %899 = vmatprep.subr.bf16.mxu0 0
        %900 = vmatpush1.bf16.xpose.msra.mxu0 0
        %901 = vmatprep.subr.bf16.mxu0 0
        %902 = vmatpush1.bf16.xpose.msra.mxu0 0
        %903 = vmatprep.subr.bf16.mxu0 0
        %904 = vmatpush1.bf16.xpose.msra.mxu0 0
        %905 = vmatprep.subr.bf16.mxu0 0
        %906 = vmatpush1.bf16.xpose.msra.mxu0 0
        %907 = vmatprep.subr.bf16.mxu0 0
        %908 = vmatpush1.bf16.xpose.msra.mxu0 0
        %909 = vmatprep.subr.bf16.mxu0 0
        %910 = vmatpush1.bf16.xpose.msra.mxu0 0
        %911 = vmatprep.subr.bf16.mxu0 0
        %912 = vmatpush1.bf16.xpose.msra.mxu0 0
        %913 = vmatprep.subr.bf16.mxu0 0
        %914 = vmatpush1.bf16.xpose.msra.mxu0 0
        %915 = vmatprep.subr.bf16.mxu0 0
        %916 = vmatpush1.bf16.xpose.msra.mxu0 0
        %917 = vmatprep.subr.bf16.mxu0 0
        %918 = vmatpush1.bf16.xpose.msra.mxu0 0
        %919 = vmatprep.subr.bf16.mxu0 0
        %920 = vmatpush1.bf16.xpose.msra.mxu0 0
        %921 = vmatprep.subr.bf16.mxu0 0
        %922 = vmatpush1.bf16.xpose.msra.mxu0 0
        %923 = vmatprep.mubr.bf16.mxu0 0
        %924 = vmatmul.mubr.bf16.gmra.mrb[0].mxu0 %v585
        %v925 = vpop.f32.mrb[0].mxu0
        %v926 = vadd.f32 0.0, %v925
        %v927 = vpop.f32.mrb[0].mxu0
        %v928 = vpop.f32.mrb[0].mxu0
        %v929 = vpop.f32.mrb[0].mxu0
        %930 = vdwg.mxu0
        %v931 = vmul.f32 %v625, 0.5
        %v932 = vmul.f32 %v668, 0.5
        %v933 = vmul.f32 %v711, 0.5
        %v934 = vmul.f32 %v754, 0.5
        %v935 = vmul.f32 %v797, 0.5
        %v936 = vmul.f32 %v840, 0.5
        %v937 = vmul.f32 %v883, 0.5
        %v938 = vmul.f32 %v926, 0.5
        %v939 = vpack.c.bf16 %v931, %v931
        %v940 = vpack.c.bf16 %v932, %v932
        %v941 = vpack.c.bf16 %v933, %v933
        %v942 = vpack.c.bf16 %v934, %v934
        %v943 = vpack.c.bf16 %v935, %v935
        %v944 = vpack.c.bf16 %v936, %v936
        %v945 = vpack.c.bf16 %v937, %v937
        %v946 = vpack.c.bf16 %v938, %v938
        %v947 = vld [vmem:[#allocation2] sm:$0xff]
        %v948 = vld [vmem:[#allocation2 + $0x8] sm:$0xff]
        %v949 = vld [vmem:[#allocation2 + $0x10] sm:$0xff]
        %v950 = vld [vmem:[#allocation2 + $0x18] sm:$0xff]
        %v951 = vld [vmem:[#allocation2 + $0x20] sm:$0xff]
        %v952 = vld [vmem:[#allocation2 + $0x28] sm:$0xff]
        %v953 = vld [vmem:[#allocation2 + $0x30] sm:$0xff]
        %v954 = vld [vmem:[#allocation2 + $0x38] sm:$0xff]
        %vm955 = vcmask 31744
        %v957 = vsel %vm955, %v939, 0
        %v960 = vsel %vm955, %v947, 0
        %962 = vmatprep.subr.bf16.mxu0 0
        %963 = vmatpush1.bf16.xpose.msra.mxu0 %v960
        %964 = vmatprep.subr.bf16.mxu0 0
        %965 = vmatpush1.bf16.xpose.msra.mxu0 0
        %966 = vmatprep.subr.bf16.mxu0 0
        %967 = vmatpush1.bf16.xpose.msra.mxu0 0
        %968 = vmatprep.subr.bf16.mxu0 0
        %969 = vmatpush1.bf16.xpose.msra.mxu0 0
        %970 = vmatprep.subr.bf16.mxu0 0
        %971 = vmatpush1.bf16.xpose.msra.mxu0 0
        %972 = vmatprep.subr.bf16.mxu0 0
        %973 = vmatpush1.bf16.xpose.msra.mxu0 0
        %974 = vmatprep.subr.bf16.mxu0 0
        %975 = vmatpush1.bf16.xpose.msra.mxu0 0
        %976 = vmatprep.subr.bf16.mxu0 0
        %977 = vmatpush1.bf16.xpose.msra.mxu0 0
        %978 = vmatprep.subr.bf16.mxu0 0
        %979 = vmatpush1.bf16.xpose.msra.mxu0 0
        %980 = vmatprep.subr.bf16.mxu0 0
        %981 = vmatpush1.bf16.xpose.msra.mxu0 0
        %982 = vmatprep.subr.bf16.mxu0 0
        %983 = vmatpush1.bf16.xpose.msra.mxu0 0
        %984 = vmatprep.subr.bf16.mxu0 0
        %985 = vmatpush1.bf16.xpose.msra.mxu0 0
        %986 = vmatprep.subr.bf16.mxu0 0
        %987 = vmatpush1.bf16.xpose.msra.mxu0 0
        %988 = vmatprep.subr.bf16.mxu0 0
        %989 = vmatpush1.bf16.xpose.msra.mxu0 0
        %990 = vmatprep.subr.bf16.mxu0 0
        %991 = vmatpush1.bf16.xpose.msra.mxu0 0
        %992 = vmatprep.subr.bf16.mxu0 0
        %993 = vmatpush1.bf16.xpose.msra.mxu0 0
        %994 = vmatprep.mubr.bf16.mxu0 0
        %995 = vmatmul.mubr.bf16.gmra.mrb[0].mxu0 %v957
        %v996 = vpop.f32.mrb[0].mxu0
        %v997 = vadd.f32 0.0, %v996
        %v998 = vpop.f32.mrb[0].mxu0
        %v999 = vpop.f32.mrb[0].mxu0
        %v1000 = vpop.f32.mrb[0].mxu0
        %1001 = vdwg.mxu0
        %v1003 = vsel %vm955, %v940, 0
        %v1006 = vsel %vm955, %v948, 0
        %1008 = vmatprep.subr.bf16.mxu0 0
        %1009 = vmatpush1.bf16.xpose.msra.mxu0 %v1006
        %1010 = vmatprep.subr.bf16.mxu0 0
        %1011 = vmatpush1.bf16.xpose.msra.mxu0 0
        %1012 = vmatprep.subr.bf16.mxu0 0
        %1013 = vmatpush1.bf16.xpose.msra.mxu0 0
        %1014 = vmatprep.subr.bf16.mxu0 0
        %1015 = vmatpush1.bf16.xpose.msra.mxu0 0
        %1016 = vmatprep.subr.bf16.mxu0 0
        %1017 = vmatpush1.bf16.xpose.msra.mxu0 0
        %1018 = vmatprep.subr.bf16.mxu0 0
        %1019 = vmatpush1.bf16.xpose.msra.mxu0 0
        %1020 = vmatprep.subr.bf16.mxu0 0
        %1021 = vmatpush1.bf16.xpose.msra.mxu0 0
        %1022 = vmatprep.subr.bf16.mxu0 0
        %1023 = vmatpush1.bf16.xpose.msra.mxu0 0
        %1024 = vmatprep.subr.bf16.mxu0 0
        %1025 = vmatpush1.bf16.xpose.msra.mxu0 0
        %1026 = vmatprep.subr.bf16.mxu0 0
        %1027 = vmatpush1.bf16.xpose.msra.mxu0 0
        %1028 = vmatprep.subr.bf16.mxu0 0
        %1029 = vmatpush1.bf16.xpose.msra.mxu0 0
        %1030 = vmatprep.subr.bf16.mxu0 0
        %1031 = vmatpush1.bf16.xpose.msra.mxu0 0
        %1032 = vmatprep.subr.bf16.mxu0 0
        %1033 = vmatpush1.bf16.xpose.msra.mxu0 0
        %1034 = vmatprep.subr.bf16.mxu0 0
        %1035 = vmatpush1.bf16.xpose.msra.mxu0 0
        %1036 = vmatprep.subr.bf16.mxu0 0
        %1037 = vmatpush1.bf16.xpose.msra.mxu0 0
        %1038 = vmatprep.subr.bf16.mxu0 0
        %1039 = vmatpush1.bf16.xpose.msra.mxu0 0
        %1040 = vmatprep.mubr.bf16.mxu0 0
        %1041 = vmatmul.mubr.bf16.gmra.mrb[0].mxu0 %v1003
        %v1042 = vpop.f32.mrb[0].mxu0
        %v1043 = vadd.f32 0.0, %v1042
        %v1044 = vpop.f32.mrb[0].mxu0
        %v1045 = vpop.f32.mrb[0].mxu0
        %v1046 = vpop.f32.mrb[0].mxu0
        %1047 = vdwg.mxu0
        %v1049 = vsel %vm955, %v941, 0
        %v1052 = vsel %vm955, %v949, 0
        %1054 = vmatprep.subr.bf16.mxu0 0
        %1055 = vmatpush1.bf16.xpose.msra.mxu0 %v1052
        %1056 = vmatprep.subr.bf16.mxu0 0
        %1057 = vmatpush1.bf16.xpose.msra.mxu0 0
        %1058 = vmatprep.subr.bf16.mxu0 0
        %1059 = vmatpush1.bf16.xpose.msra.mxu0 0
        %1060 = vmatprep.subr.bf16.mxu0 0
        %1061 = vmatpush1.bf16.xpose.msra.mxu0 0
        %1062 = vmatprep.subr.bf16.mxu0 0
        %1063 = vmatpush1.bf16.xpose.msra.mxu0 0
        %1064 = vmatprep.subr.bf16.mxu0 0
        %1065 = vmatpush1.bf16.xpose.msra.mxu0 0
        %1066 = vmatprep.subr.bf16.mxu0 0
        %1067 = vmatpush1.bf16.xpose.msra.mxu0 0
        %1068 = vmatprep.subr.bf16.mxu0 0
        %1069 = vmatpush1.bf16.xpose.msra.mxu0 0
        %1070 = vmatprep.subr.bf16.mxu0 0
        %1071 = vmatpush1.bf16.xpose.msra.mxu0 0
        %1072 = vmatprep.subr.bf16.mxu0 0
        %1073 = vmatpush1.bf16.xpose.msra.mxu0 0
        %1074 = vmatprep.subr.bf16.mxu0 0
        %1075 = vmatpush1.bf16.xpose.msra.mxu0 0
        %1076 = vmatprep.subr.bf16.mxu0 0
        %1077 = vmatpush1.bf16.xpose.msra.mxu0 0
        %1078 = vmatprep.subr.bf16.mxu0 0
        %1079 = vmatpush1.bf16.xpose.msra.mxu0 0
        %1080 = vmatprep.subr.bf16.mxu0 0
        %1081 = vmatpush1.bf16.xpose.msra.mxu0 0
        %1082 = vmatprep.subr.bf16.mxu0 0
        %1083 = vmatpush1.bf16.xpose.msra.mxu0 0
        %1084 = vmatprep.subr.bf16.mxu0 0
        %1085 = vmatpush1.bf16.xpose.msra.mxu0 0
        %1086 = vmatprep.mubr.bf16.mxu0 0
        %1087 = vmatmul.mubr.bf16.gmra.mrb[0].mxu0 %v1049
        %v1088 = vpop.f32.mrb[0].mxu0
        %v1089 = vadd.f32 0.0, %v1088
        %v1090 = vpop.f32.mrb[0].mxu0
        %v1091 = vpop.f32.mrb[0].mxu0
        %v1092 = vpop.f32.mrb[0].mxu0
        %1093 = vdwg.mxu0
        %v1095 = vsel %vm955, %v942, 0
        %v1098 = vsel %vm955, %v950, 0
        %1100 = vmatprep.subr.bf16.mxu0 0
        %1101 = vmatpush1.bf16.xpose.msra.mxu0 %v1098
        %1102 = vmatprep.subr.bf16.mxu0 0
        %1103 = vmatpush1.bf16.xpose.msra.mxu0 0
        %1104 = vmatprep.subr.bf16.mxu0 0
        %1105 = vmatpush1.bf16.xpose.msra.mxu0 0
        %1106 = vmatprep.subr.bf16.mxu0 0
        %1107 = vmatpush1.bf16.xpose.msra.mxu0 0
        %1108 = vmatprep.subr.bf16.mxu0 0
        %1109 = vmatpush1.bf16.xpose.msra.mxu0 0
        %1110 = vmatprep.subr.bf16.mxu0 0
        %1111 = vmatpush1.bf16.xpose.msra.mxu0 0
        %1112 = vmatprep.subr.bf16.mxu0 0
        %1113 = vmatpush1.bf16.xpose.msra.mxu0 0
        %1114 = vmatprep.subr.bf16.mxu0 0
        %1115 = vmatpush1.bf16.xpose.msra.mxu0 0
        %1116 = vmatprep.subr.bf16.mxu0 0
        %1117 = vmatpush1.bf16.xpose.msra.mxu0 0
        %1118 = vmatprep.subr.bf16.mxu0 0
        %1119 = vmatpush1.bf16.xpose.msra.mxu0 0
        %1120 = vmatprep.subr.bf16.mxu0 0
        %1121 = vmatpush1.bf16.xpose.msra.mxu0 0
        %1122 = vmatprep.subr.bf16.mxu0 0
        %1123 = vmatpush1.bf16.xpose.msra.mxu0 0
        %1124 = vmatprep.subr.bf16.mxu0 0
        %1125 = vmatpush1.bf16.xpose.msra.mxu0 0
        %1126 = vmatprep.subr.bf16.mxu0 0
        %1127 = vmatpush1.bf16.xpose.msra.mxu0 0
        %1128 = vmatprep.subr.bf16.mxu0 0
        %1129 = vmatpush1.bf16.xpose.msra.mxu0 0
        %1130 = vmatprep.subr.bf16.mxu0 0
        %1131 = vmatpush1.bf16.xpose.msra.mxu0 0
        %1132 = vmatprep.mubr.bf16.mxu0 0
        %1133 = vmatmul.mubr.bf16.gmra.mrb[0].mxu0 %v1095
        %v1134 = vpop.f32.mrb[0].mxu0
        %v1135 = vadd.f32 0.0, %v1134
        %v1136 = vpop.f32.mrb[0].mxu0
        %v1137 = vpop.f32.mrb[0].mxu0
        %v1138 = vpop.f32.mrb[0].mxu0
        %1139 = vdwg.mxu0
        %v1141 = vsel %vm955, %v943, 0
        %v1144 = vsel %vm955, %v951, 0
        %1146 = vmatprep.subr.bf16.mxu0 0
        %1147 = vmatpush1.bf16.xpose.msra.mxu0 %v1144
        %1148 = vmatprep.subr.bf16.mxu0 0
        %1149 = vmatpush1.bf16.xpose.msra.mxu0 0
        %1150 = vmatprep.subr.bf16.mxu0 0
        %1151 = vmatpush1.bf16.xpose.msra.mxu0 0
        %1152 = vmatprep.subr.bf16.mxu0 0
        %1153 = vmatpush1.bf16.xpose.msra.mxu0 0
        %1154 = vmatprep.subr.bf16.mxu0 0
        %1155 = vmatpush1.bf16.xpose.msra.mxu0 0
        %1156 = vmatprep.subr.bf16.mxu0 0
        %1157 = vmatpush1.bf16.xpose.msra.mxu0 0
        %1158 = vmatprep.subr.bf16.mxu0 0
        %1159 = vmatpush1.bf16.xpose.msra.mxu0 0
        %1160 = vmatprep.subr.bf16.mxu0 0
        %1161 = vmatpush1.bf16.xpose.msra.mxu0 0
        %1162 = vmatprep.subr.bf16.mxu0 0
        %1163 = vmatpush1.bf16.xpose.msra.mxu0 0
        %1164 = vmatprep.subr.bf16.mxu0 0
        %1165 = vmatpush1.bf16.xpose.msra.mxu0 0
        %1166 = vmatprep.subr.bf16.mxu0 0
        %1167 = vmatpush1.bf16.xpose.msra.mxu0 0
        %1168 = vmatprep.subr.bf16.mxu0 0
        %1169 = vmatpush1.bf16.xpose.msra.mxu0 0
        %1170 = vmatprep.subr.bf16.mxu0 0
        %1171 = vmatpush1.bf16.xpose.msra.mxu0 0
        %1172 = vmatprep.subr.bf16.mxu0 0
        %1173 = vmatpush1.bf16.xpose.msra.mxu0 0
        %1174 = vmatprep.subr.bf16.mxu0 0
        %1175 = vmatpush1.bf16.xpose.msra.mxu0 0
        %1176 = vmatprep.subr.bf16.mxu0 0
        %1177 = vmatpush1.bf16.xpose.msra.mxu0 0
        %1178 = vmatprep.mubr.bf16.mxu0 0
        %1179 = vmatmul.mubr.bf16.gmra.mrb[0].mxu0 %v1141
        %v1180 = vpop.f32.mrb[0].mxu0
        %v1181 = vadd.f32 0.0, %v1180
        %v1182 = vpop.f32.mrb[0].mxu0
        %v1183 = vpop.f32.mrb[0].mxu0
        %v1184 = vpop.f32.mrb[0].mxu0
        %1185 = vdwg.mxu0
        %v1187 = vsel %vm955, %v944, 0
        %v1190 = vsel %vm955, %v952, 0
        %1192 = vmatprep.subr.bf16.mxu0 0
        %1193 = vmatpush1.bf16.xpose.msra.mxu0 %v1190
        %1194 = vmatprep.subr.bf16.mxu0 0
        %1195 = vmatpush1.bf16.xpose.msra.mxu0 0
        %1196 = vmatprep.subr.bf16.mxu0 0
        %1197 = vmatpush1.bf16.xpose.msra.mxu0 0
        %1198 = vmatprep.subr.bf16.mxu0 0
        %1199 = vmatpush1.bf16.xpose.msra.mxu0 0
        %1200 = vmatprep.subr.bf16.mxu0 0
        %1201 = vmatpush1.bf16.xpose.msra.mxu0 0
        %1202 = vmatprep.subr.bf16.mxu0 0
        %1203 = vmatpush1.bf16.xpose.msra.mxu0 0
        %1204 = vmatprep.subr.bf16.mxu0 0
        %1205 = vmatpush1.bf16.xpose.msra.mxu0 0
        %1206 = vmatprep.subr.bf16.mxu0 0
        %1207 = vmatpush1.bf16.xpose.msra.mxu0 0
        %1208 = vmatprep.subr.bf16.mxu0 0
        %1209 = vmatpush1.bf16.xpose.msra.mxu0 0
        %1210 = vmatprep.subr.bf16.mxu0 0
        %1211 = vmatpush1.bf16.xpose.msra.mxu0 0
        %1212 = vmatprep.subr.bf16.mxu0 0
        %1213 = vmatpush1.bf16.xpose.msra.mxu0 0
        %1214 = vmatprep.subr.bf16.mxu0 0
        %1215 = vmatpush1.bf16.xpose.msra.mxu0 0
        %1216 = vmatprep.subr.bf16.mxu0 0
        %1217 = vmatpush1.bf16.xpose.msra.mxu0 0
        %1218 = vmatprep.subr.bf16.mxu0 0
        %1219 = vmatpush1.bf16.xpose.msra.mxu0 0
        %1220 = vmatprep.subr.bf16.mxu0 0
        %1221 = vmatpush1.bf16.xpose.msra.mxu0 0
        %1222 = vmatprep.subr.bf16.mxu0 0
        %1223 = vmatpush1.bf16.xpose.msra.mxu0 0
        %1224 = vmatprep.mubr.bf16.mxu0 0
        %1225 = vmatmul.mubr.bf16.gmra.mrb[0].mxu0 %v1187
        %v1226 = vpop.f32.mrb[0].mxu0
        %v1227 = vadd.f32 0.0, %v1226
        %v1228 = vpop.f32.mrb[0].mxu0
        %v1229 = vpop.f32.mrb[0].mxu0
        %v1230 = vpop.f32.mrb[0].mxu0
        %1231 = vdwg.mxu0
        %v1233 = vsel %vm955, %v945, 0
        %v1236 = vsel %vm955, %v953, 0
        %1238 = vmatprep.subr.bf16.mxu0 0
        %1239 = vmatpush1.bf16.xpose.msra.mxu0 %v1236
        %1240 = vmatprep.subr.bf16.mxu0 0
        %1241 = vmatpush1.bf16.xpose.msra.mxu0 0
        %1242 = vmatprep.subr.bf16.mxu0 0
        %1243 = vmatpush1.bf16.xpose.msra.mxu0 0
        %1244 = vmatprep.subr.bf16.mxu0 0
        %1245 = vmatpush1.bf16.xpose.msra.mxu0 0
        %1246 = vmatprep.subr.bf16.mxu0 0
        %1247 = vmatpush1.bf16.xpose.msra.mxu0 0
        %1248 = vmatprep.subr.bf16.mxu0 0
        %1249 = vmatpush1.bf16.xpose.msra.mxu0 0
        %1250 = vmatprep.subr.bf16.mxu0 0
        %1251 = vmatpush1.bf16.xpose.msra.mxu0 0
        %1252 = vmatprep.subr.bf16.mxu0 0
        %1253 = vmatpush1.bf16.xpose.msra.mxu0 0
        %1254 = vmatprep.subr.bf16.mxu0 0
        %1255 = vmatpush1.bf16.xpose.msra.mxu0 0
        %1256 = vmatprep.subr.bf16.mxu0 0
        %1257 = vmatpush1.bf16.xpose.msra.mxu0 0
        %1258 = vmatprep.subr.bf16.mxu0 0
        %1259 = vmatpush1.bf16.xpose.msra.mxu0 0
        %1260 = vmatprep.subr.bf16.mxu0 0
        %1261 = vmatpush1.bf16.xpose.msra.mxu0 0
        %1262 = vmatprep.subr.bf16.mxu0 0
        %1263 = vmatpush1.bf16.xpose.msra.mxu0 0
        %1264 = vmatprep.subr.bf16.mxu0 0
        %1265 = vmatpush1.bf16.xpose.msra.mxu0 0
        %1266 = vmatprep.subr.bf16.mxu0 0
        %1267 = vmatpush1.bf16.xpose.msra.mxu0 0
        %1268 = vmatprep.subr.bf16.mxu0 0
        %1269 = vmatpush1.bf16.xpose.msra.mxu0 0
        %1270 = vmatprep.mubr.bf16.mxu0 0
        %1271 = vmatmul.mubr.bf16.gmra.mrb[0].mxu0 %v1233
        %v1272 = vpop.f32.mrb[0].mxu0
        %v1273 = vadd.f32 0.0, %v1272
        %v1274 = vpop.f32.mrb[0].mxu0
        %v1275 = vpop.f32.mrb[0].mxu0
        %v1276 = vpop.f32.mrb[0].mxu0
        %1277 = vdwg.mxu0
        %v1279 = vsel %vm955, %v946, 0
        %v1282 = vsel %vm955, %v954, 0
        %1284 = vmatprep.subr.bf16.mxu0 0
        %1285 = vmatpush1.bf16.xpose.msra.mxu0 %v1282
        %1286 = vmatprep.subr.bf16.mxu0 0
        %1287 = vmatpush1.bf16.xpose.msra.mxu0 0
        %1288 = vmatprep.subr.bf16.mxu0 0
        %1289 = vmatpush1.bf16.xpose.msra.mxu0 0
        %1290 = vmatprep.subr.bf16.mxu0 0
        %1291 = vmatpush1.bf16.xpose.msra.mxu0 0
        %1292 = vmatprep.subr.bf16.mxu0 0
        %1293 = vmatpush1.bf16.xpose.msra.mxu0 0
        %1294 = vmatprep.subr.bf16.mxu0 0
        %1295 = vmatpush1.bf16.xpose.msra.mxu0 0
        %1296 = vmatprep.subr.bf16.mxu0 0
        %1297 = vmatpush1.bf16.xpose.msra.mxu0 0
        %1298 = vmatprep.subr.bf16.mxu0 0
        %1299 = vmatpush1.bf16.xpose.msra.mxu0 0
        %1300 = vmatprep.subr.bf16.mxu0 0
        %1301 = vmatpush1.bf16.xpose.msra.mxu0 0
        %1302 = vmatprep.subr.bf16.mxu0 0
        %1303 = vmatpush1.bf16.xpose.msra.mxu0 0
        %1304 = vmatprep.subr.bf16.mxu0 0
        %1305 = vmatpush1.bf16.xpose.msra.mxu0 0
        %1306 = vmatprep.subr.bf16.mxu0 0
        %1307 = vmatpush1.bf16.xpose.msra.mxu0 0
        %1308 = vmatprep.subr.bf16.mxu0 0
        %1309 = vmatpush1.bf16.xpose.msra.mxu0 0
        %1310 = vmatprep.subr.bf16.mxu0 0
        %1311 = vmatpush1.bf16.xpose.msra.mxu0 0
        %1312 = vmatprep.subr.bf16.mxu0 0
        %1313 = vmatpush1.bf16.xpose.msra.mxu0 0
        %1314 = vmatprep.subr.bf16.mxu0 0
        %1315 = vmatpush1.bf16.xpose.msra.mxu0 0
        %1316 = vmatprep.mubr.bf16.mxu0 0
        %1317 = vmatmul.mubr.bf16.gmra.mrb[0].mxu0 %v1279
        %v1318 = vpop.f32.mrb[0].mxu0
        %v1319 = vadd.f32 0.0, %v1318
        %v1320 = vpop.f32.mrb[0].mxu0
        %v1321 = vpop.f32.mrb[0].mxu0
        %v1322 = vpop.f32.mrb[0].mxu0
        %1323 = vdwg.mxu0
        %vm1324 = vcmask 130048
        %v1325 = vsel %vm1324, %v997, -inf
        %1326 = vmax.xlane.f32.xlu0 %v1325
        %v1327 = vpop.xlane.xlu0 %1326
        %v1328 = vsel %vm1324, %v1043, -inf
        %1329 = vmax.xlane.f32.xlu0 %v1328
        %v1330 = vpop.xlane.xlu0 %1329
        %v1331 = vsel %vm1324, %v1089, -inf
        %1332 = vmax.xlane.f32.xlu0 %v1331
        %v1333 = vpop.xlane.xlu0 %1332
        %v1334 = vsel %vm1324, %v1135, -inf
        %1335 = vmax.xlane.f32.xlu0 %v1334
        %v1336 = vpop.xlane.xlu0 %1335
        %v1337 = vsel %vm1324, %v1181, -inf
        %1338 = vmax.xlane.f32.xlu0 %v1337
        %v1339 = vpop.xlane.xlu0 %1338
        %v1340 = vsel %vm1324, %v1227, -inf
        %1341 = vmax.xlane.f32.xlu0 %v1340
        %v1342 = vpop.xlane.xlu0 %1341
        %v1343 = vsel %vm1324, %v1273, -inf
        %1344 = vmax.xlane.f32.xlu0 %v1343
        %v1345 = vpop.xlane.xlu0 %1344
        %v1346 = vsel %vm1324, %v1319, -inf
        %1347 = vmax.xlane.f32.xlu0 %v1346
        %v1348 = vpop.xlane.xlu0 %1347
        %v1349 = vsub.f32 %v997, %v1327
        %v1350 = vsub.f32 %v1043, %v1330
        %v1351 = vsub.f32 %v1089, %v1333
        %v1352 = vsub.f32 %v1135, %v1336
        %v1353 = vsub.f32 %v1181, %v1339
        %v1354 = vsub.f32 %v1227, %v1342
        %v1355 = vsub.f32 %v1273, %v1345
        %v1356 = vsub.f32 %v1319, %v1348
        %v1357 = vmul.f32 %v1349, 1.442695
        %v1358 = vpow.pop %v1357
        %v1359 = vmul.f32 %v1350, 1.442695
        %v1360 = vpow.pop %v1359
        %v1361 = vmul.f32 %v1351, 1.442695
        %v1362 = vpow.pop %v1361
        %v1363 = vmul.f32 %v1352, 1.442695
        %v1364 = vpow.pop %v1363
        %v1365 = vmul.f32 %v1353, 1.442695
        %v1366 = vpow.pop %v1365
        %v1367 = vmul.f32 %v1354, 1.442695
        %v1368 = vpow.pop %v1367
        %v1369 = vmul.f32 %v1355, 1.442695
        %v1370 = vpow.pop %v1369
        %v1371 = vmul.f32 %v1356, 1.442695
        %v1372 = vpow.pop %v1371
        %v1373 = vsel %vm1324, %v1358, 0.0
        %1374 = vadd.xlane.f32.xlu0 %v1373
        %v1375 = vpop.xlane.xlu0 %1374
        %v1376 = vsel %vm1324, %v1360, 0.0
        %1377 = vadd.xlane.f32.xlu0 %v1376
        %v1378 = vpop.xlane.xlu0 %1377
        %v1379 = vsel %vm1324, %v1362, 0.0
        %1380 = vadd.xlane.f32.xlu0 %v1379
        %v1381 = vpop.xlane.xlu0 %1380
        %v1382 = vsel %vm1324, %v1364, 0.0
        %1383 = vadd.xlane.f32.xlu0 %v1382
        %v1384 = vpop.xlane.xlu0 %1383
        %v1385 = vsel %vm1324, %v1366, 0.0
        %1386 = vadd.xlane.f32.xlu0 %v1385
        %v1387 = vpop.xlane.xlu0 %1386
        %v1388 = vsel %vm1324, %v1368, 0.0
        %1389 = vadd.xlane.f32.xlu0 %v1388
        %v1390 = vpop.xlane.xlu0 %1389
        %v1391 = vsel %vm1324, %v1370, 0.0
        %1392 = vadd.xlane.f32.xlu0 %v1391
        %v1393 = vpop.xlane.xlu0 %1392
        %v1394 = vsel %vm1324, %v1372, 0.0
        %1395 = vadd.xlane.f32.xlu0 %v1394
        %v1396 = vpop.xlane.xlu0 %1395
        %v1397 = vrcp.pop %v1375
        %v1398 = vrcp.pop %v1378
        %v1399 = vrcp.pop %v1381
        %v1400 = vrcp.pop %v1384
        %v1401 = vrcp.pop %v1387
        %v1402 = vrcp.pop %v1390
        %v1403 = vrcp.pop %v1393
        %v1404 = vrcp.pop %v1396
        %v1405 = vmul.f32 %v1358, %v1397
        %v1406 = vmul.f32 %v1360, %v1398
        %v1407 = vmul.f32 %v1362, %v1399
        %v1408 = vmul.f32 %v1364, %v1400
        %v1409 = vmul.f32 %v1366, %v1401
        %v1410 = vmul.f32 %v1368, %v1402
        %v1411 = vmul.f32 %v1370, %v1403
        %v1412 = vmul.f32 %v1372, %v1404
        %v1413 = vcombine.low %v1405, %v1407
        %v1414 = vcombine.high %v1405, %v1407
        %v1416 = vunpack.c.l.s4 1983009808
        %v1417 = vunpack.c.0.s8 %v1416
        %v1418 = vlaneseq
        %v1419 = vshrl.u32 %v1418, 7
        %v1420 = vsub.s32 %v1417, %v1419
        %v1421 = vrot.slane %v1413, %v1420
        %v1423 = vunpack.c.l.s4 1983009808
        %v1424 = vunpack.c.0.s8 %v1423
        %v1425 = vlaneseq
        %v1426 = vshrl.u32 %v1425, 7
        %v1427 = vsub.s32 %v1424, %v1426
        %v1428 = vrot.slane %v1414, %v1427
        %v1429 = vcombine.low %v1406, %v1408
        %v1430 = vcombine.high %v1406, %v1408
        %v1432 = vunpack.c.l.s4 1983009808
        %v1433 = vunpack.c.0.s8 %v1432
        %v1434 = vlaneseq
        %v1435 = vshrl.u32 %v1434, 7
        %v1436 = vsub.s32 %v1433, %v1435
        %v1437 = vrot.slane %v1429, %v1436
        %v1439 = vunpack.c.l.s4 1983009808
        %v1440 = vunpack.c.0.s8 %v1439
        %v1441 = vlaneseq
        %v1442 = vshrl.u32 %v1441, 7
        %v1443 = vsub.s32 %v1440, %v1442
        %v1444 = vrot.slane %v1430, %v1443
        %v1445 = vcombine.low %v1409, %v1411
        %v1446 = vcombine.high %v1409, %v1411
        %v1448 = vunpack.c.l.s4 1983009808
        %v1449 = vunpack.c.0.s8 %v1448
        %v1450 = vlaneseq
        %v1451 = vshrl.u32 %v1450, 7
        %v1452 = vsub.s32 %v1449, %v1451
        %v1453 = vrot.slane %v1445, %v1452
        %v1455 = vunpack.c.l.s4 1983009808
        %v1456 = vunpack.c.0.s8 %v1455
        %v1457 = vlaneseq
        %v1458 = vshrl.u32 %v1457, 7
        %v1459 = vsub.s32 %v1456, %v1458
        %v1460 = vrot.slane %v1446, %v1459
        %v1461 = vcombine.low %v1410, %v1412
        %v1462 = vcombine.high %v1410, %v1412
        %v1464 = vunpack.c.l.s4 1983009808
        %v1465 = vunpack.c.0.s8 %v1464
        %v1466 = vlaneseq
        %v1467 = vshrl.u32 %v1466, 7
        %v1468 = vsub.s32 %v1465, %v1467
        %v1469 = vrot.slane %v1461, %v1468
        %v1471 = vunpack.c.l.s4 1983009808
        %v1472 = vunpack.c.0.s8 %v1471
        %v1473 = vlaneseq
        %v1474 = vshrl.u32 %v1473, 7
        %v1475 = vsub.s32 %v1472, %v1474
        %v1476 = vrot.slane %v1462, %v1475
        %v1477 = vcombine.low %v1421, %v1437
        %v1478 = vcombine.high %v1421, %v1437
        %v1480 = vunpack.c.l.s4 1934713408
        %v1481 = vunpack.c.0.s8 %v1480
        %v1482 = vlaneseq
        %v1483 = vshrl.u32 %v1482, 7
        %v1484 = vsub.s32 %v1481, %v1483
        %v1485 = vrot.slane %v1477, %v1484
        %v1487 = vunpack.c.l.s4 1934713408
        %v1488 = vunpack.c.0.s8 %v1487
        %v1489 = vlaneseq
        %v1490 = vshrl.u32 %v1489, 7
        %v1491 = vsub.s32 %v1488, %v1490
        %v1492 = vrot.slane %v1478, %v1491
        %v1493 = vcombine.low %v1428, %v1444
        %v1494 = vcombine.high %v1428, %v1444
        %v1496 = vunpack.c.l.s4 1934713408
        %v1497 = vunpack.c.0.s8 %v1496
        %v1498 = vlaneseq
        %v1499 = vshrl.u32 %v1498, 7
        %v1500 = vsub.s32 %v1497, %v1499
        %v1501 = vrot.slane %v1493, %v1500
        %v1503 = vunpack.c.l.s4 1934713408
        %v1504 = vunpack.c.0.s8 %v1503
        %v1505 = vlaneseq
        %v1506 = vshrl.u32 %v1505, 7
        %v1507 = vsub.s32 %v1504, %v1506
        %v1508 = vrot.slane %v1494, %v1507
        %v1509 = vcombine.low %v1453, %v1469
        %v1510 = vcombine.high %v1453, %v1469
        %v1512 = vunpack.c.l.s4 1934713408
        %v1513 = vunpack.c.0.s8 %v1512
        %v1514 = vlaneseq
        %v1515 = vshrl.u32 %v1514, 7
        %v1516 = vsub.s32 %v1513, %v1515
        %v1517 = vrot.slane %v1509, %v1516
        %v1519 = vunpack.c.l.s4 1934713408
        %v1520 = vunpack.c.0.s8 %v1519
        %v1521 = vlaneseq
        %v1522 = vshrl.u32 %v1521, 7
        %v1523 = vsub.s32 %v1520, %v1522
        %v1524 = vrot.slane %v1510, %v1523
        %v1525 = vcombine.low %v1460, %v1476
        %v1526 = vcombine.high %v1460, %v1476
        %v1528 = vunpack.c.l.s4 1934713408
        %v1529 = vunpack.c.0.s8 %v1528
        %v1530 = vlaneseq
        %v1531 = vshrl.u32 %v1530, 7
        %v1532 = vsub.s32 %v1529, %v1531
        %v1533 = vrot.slane %v1525, %v1532
        %v1535 = vunpack.c.l.s4 1934713408
        %v1536 = vunpack.c.0.s8 %v1535
        %v1537 = vlaneseq
        %v1538 = vshrl.u32 %v1537, 7
        %v1539 = vsub.s32 %v1536, %v1538
        %v1540 = vrot.slane %v1526, %v1539
        %v1541 = vcombine.low %v1485, %v1517
        %v1542 = vcombine.high %v1485, %v1517
        %v1543 = vcombine.low %v1492, %v1524
        %v1544 = vcombine.high %v1492, %v1524
        %v1545 = vcombine.low %v1501, %v1533
        %v1546 = vcombine.high %v1501, %v1533
        %v1547 = vcombine.low %v1508, %v1540
        %v1548 = vcombine.high %v1508, %v1540
        %1550 = vrot.lane.b32.xlu0 %v1542, 16
        %v1551 = vpop.permute.xlu0 %1550
        %1554 = vrot.lane.b32.xlu0 %v1543, 32
        %v1555 = vpop.permute.xlu0 %1554
        %1558 = vrot.lane.b32.xlu0 %v1544, 48
        %v1559 = vpop.permute.xlu0 %1558
        %1562 = vrot.lane.b32.xlu0 %v1545, 64
        %v1563 = vpop.permute.xlu0 %1562
        %1566 = vrot.lane.b32.xlu0 %v1546, 80
        %v1567 = vpop.permute.xlu0 %1566
        %1570 = vrot.lane.b32.xlu0 %v1547, 96
        %v1571 = vpop.permute.xlu0 %1570
        %1574 = vrot.lane.b32.xlu0 %v1548, 112
        %v1575 = vpop.permute.xlu0 %1574
        %v1577 = vsel %vm1324, %v1541, %v1551
        %v1578 = vsel %vm583, %v1577, %v1555
        %vm1579 = vcmask 392192
        %v1580 = vsel %vm1579, %v1578, %v1559
        %vm1581 = vcmask 523264
        %v1582 = vsel %vm1581, %v1580, %v1563
        %vm1583 = vcmask 654336
        %v1584 = vsel %vm1583, %v1582, %v1567
        %vm1585 = vcmask 785408
        %v1586 = vsel %vm1585, %v1584, %v1571
        %vm1587 = vcmask 916480
        %v1588 = vsel %vm1587, %v1586, %v1575
        %v1589 = vpack.c.bf16 %v1588, %v1588
        %1590 = vst [vmem:[%s346] sm:$0xf] %v1589
        %v1591 = vpack.c.bf16 %v1405, %v1405
        %v1592 = vpack.c.bf16 %v1406, %v1406
        %v1593 = vpack.c.bf16 %v1407, %v1407
        %v1594 = vpack.c.bf16 %v1408, %v1408
        %v1595 = vpack.c.bf16 %v1409, %v1409
        %v1596 = vpack.c.bf16 %v1410, %v1410
        %v1597 = vpack.c.bf16 %v1411, %v1411
        %v1598 = vpack.c.bf16 %v1412, %v1412
        %v1599 = vld [vmem:[#allocation3] sm:$0xff]
        %v1600 = vld [vmem:[#allocation3 + $0x8] sm:$0xff]
        %v1601 = vld [vmem:[#allocation3 + $0x10] sm:$0xff]
        %v1602 = vld [vmem:[#allocation3 + $0x18] sm:$0xff]
        %v1603 = vld [vmem:[#allocation3 + $0x20] sm:$0xff]
        %v1604 = vld [vmem:[#allocation3 + $0x28] sm:$0xff]
        %v1605 = vld [vmem:[#allocation3 + $0x30] sm:$0xff]
        %v1606 = vld [vmem:[#allocation3 + $0x38] sm:$0xff]
        %v1608 = vsel %vm1324, %v1591, 0
        %1610 = vmatprep.subr.bf16.mxu0 0
        %1611 = vmatpush1.bf16.msra.mxu0 %v1599
        %1612 = vmatprep.subr.bf16.mxu0 0
        %1613 = vmatpush1.bf16.msra.mxu0 0
        %1614 = vmatprep.subr.bf16.mxu0 0
        %1615 = vmatpush1.bf16.msra.mxu0 0
        %1616 = vmatprep.subr.bf16.mxu0 0
        %1617 = vmatpush1.bf16.msra.mxu0 0
        %1618 = vmatprep.subr.bf16.mxu0 0
        %1619 = vmatpush1.bf16.msra.mxu0 0
        %1620 = vmatprep.subr.bf16.mxu0 0
        %1621 = vmatpush1.bf16.msra.mxu0 0
        %1622 = vmatprep.subr.bf16.mxu0 0
        %1623 = vmatpush1.bf16.msra.mxu0 0
        %1624 = vmatprep.subr.bf16.mxu0 0
        %1625 = vmatpush1.bf16.msra.mxu0 0
        %1626 = vmatprep.subr.bf16.mxu0 0
        %1627 = vmatpush1.bf16.msra.mxu0 0
        %1628 = vmatprep.subr.bf16.mxu0 0
        %1629 = vmatpush1.bf16.msra.mxu0 0
        %1630 = vmatprep.subr.bf16.mxu0 0
        %1631 = vmatpush1.bf16.msra.mxu0 0
        %1632 = vmatprep.subr.bf16.mxu0 0
        %1633 = vmatpush1.bf16.msra.mxu0 0
        %1634 = vmatprep.subr.bf16.mxu0 0
        %1635 = vmatpush1.bf16.msra.mxu0 0
        %1636 = vmatprep.subr.bf16.mxu0 0
        %1637 = vmatpush1.bf16.msra.mxu0 0
        %1638 = vmatprep.subr.bf16.mxu0 0
        %1639 = vmatpush1.bf16.msra.mxu0 0
        %1640 = vmatprep.subr.bf16.mxu0 0
        %1641 = vmatpush1.bf16.msra.mxu0 0
        %1642 = vmatprep.mubr.bf16.mxu0 0
        %1643 = vmatmul.mubr.bf16.gmra.mrb[0].mxu0 %v1608
        %v1644 = vpop.f32.mrb[0].mxu0
        %v1645 = vadd.f32 0.0, %v1644
        %v1646 = vpop.f32.mrb[0].mxu0
        %v1647 = vpop.f32.mrb[0].mxu0
        %v1648 = vpop.f32.mrb[0].mxu0
        %1649 = vdwg.mxu0
        %v1651 = vsel %vm1324, %v1592, 0
        %1653 = vmatprep.subr.bf16.mxu0 0
        %1654 = vmatpush1.bf16.msra.mxu0 %v1600
        %1655 = vmatprep.subr.bf16.mxu0 0
        %1656 = vmatpush1.bf16.msra.mxu0 0
        %1657 = vmatprep.subr.bf16.mxu0 0
        %1658 = vmatpush1.bf16.msra.mxu0 0
        %1659 = vmatprep.subr.bf16.mxu0 0
        %1660 = vmatpush1.bf16.msra.mxu0 0
        %1661 = vmatprep.subr.bf16.mxu0 0
        %1662 = vmatpush1.bf16.msra.mxu0 0
        %1663 = vmatprep.subr.bf16.mxu0 0
        %1664 = vmatpush1.bf16.msra.mxu0 0
        %1665 = vmatprep.subr.bf16.mxu0 0
        %1666 = vmatpush1.bf16.msra.mxu0 0
        %1667 = vmatprep.subr.bf16.mxu0 0
        %1668 = vmatpush1.bf16.msra.mxu0 0
        %1669 = vmatprep.subr.bf16.mxu0 0
        %1670 = vmatpush1.bf16.msra.mxu0 0
        %1671 = vmatprep.subr.bf16.mxu0 0
        %1672 = vmatpush1.bf16.msra.mxu0 0
        %1673 = vmatprep.subr.bf16.mxu0 0
        %1674 = vmatpush1.bf16.msra.mxu0 0
        %1675 = vmatprep.subr.bf16.mxu0 0
        %1676 = vmatpush1.bf16.msra.mxu0 0
        %1677 = vmatprep.subr.bf16.mxu0 0
        %1678 = vmatpush1.bf16.msra.mxu0 0
        %1679 = vmatprep.subr.bf16.mxu0 0
        %1680 = vmatpush1.bf16.msra.mxu0 0
        %1681 = vmatprep.subr.bf16.mxu0 0
        %1682 = vmatpush1.bf16.msra.mxu0 0
        %1683 = vmatprep.subr.bf16.mxu0 0
        %1684 = vmatpush1.bf16.msra.mxu0 0
        %1685 = vmatprep.mubr.bf16.mxu0 0
        %1686 = vmatmul.mubr.bf16.gmra.mrb[0].mxu0 %v1651
        %v1687 = vpop.f32.mrb[0].mxu0
        %v1688 = vadd.f32 0.0, %v1687
        %v1689 = vpop.f32.mrb[0].mxu0
        %v1690 = vpop.f32.mrb[0].mxu0
        %v1691 = vpop.f32.mrb[0].mxu0
        %1692 = vdwg.mxu0
        %v1694 = vsel %vm1324, %v1593, 0
        %1696 = vmatprep.subr.bf16.mxu0 0
        %1697 = vmatpush1.bf16.msra.mxu0 %v1601
        %1698 = vmatprep.subr.bf16.mxu0 0
        %1699 = vmatpush1.bf16.msra.mxu0 0
        %1700 = vmatprep.subr.bf16.mxu0 0
        %1701 = vmatpush1.bf16.msra.mxu0 0
        %1702 = vmatprep.subr.bf16.mxu0 0
        %1703 = vmatpush1.bf16.msra.mxu0 0
        %1704 = vmatprep.subr.bf16.mxu0 0
        %1705 = vmatpush1.bf16.msra.mxu0 0
        %1706 = vmatprep.subr.bf16.mxu0 0
        %1707 = vmatpush1.bf16.msra.mxu0 0
        %1708 = vmatprep.subr.bf16.mxu0 0
        %1709 = vmatpush1.bf16.msra.mxu0 0
        %1710 = vmatprep.subr.bf16.mxu0 0
        %1711 = vmatpush1.bf16.msra.mxu0 0
        %1712 = vmatprep.subr.bf16.mxu0 0
        %1713 = vmatpush1.bf16.msra.mxu0 0
        %1714 = vmatprep.subr.bf16.mxu0 0
        %1715 = vmatpush1.bf16.msra.mxu0 0
        %1716 = vmatprep.subr.bf16.mxu0 0
        %1717 = vmatpush1.bf16.msra.mxu0 0
        %1718 = vmatprep.subr.bf16.mxu0 0
        %1719 = vmatpush1.bf16.msra.mxu0 0
        %1720 = vmatprep.subr.bf16.mxu0 0
        %1721 = vmatpush1.bf16.msra.mxu0 0
        %1722 = vmatprep.subr.bf16.mxu0 0
        %1723 = vmatpush1.bf16.msra.mxu0 0
        %1724 = vmatprep.subr.bf16.mxu0 0
        %1725 = vmatpush1.bf16.msra.mxu0 0
        %1726 = vmatprep.subr.bf16.mxu0 0
        %1727 = vmatpush1.bf16.msra.mxu0 0
        %1728 = vmatprep.mubr.bf16.mxu0 0
        %1729 = vmatmul.mubr.bf16.gmra.mrb[0].mxu0 %v1694
        %v1730 = vpop.f32.mrb[0].mxu0
        %v1731 = vadd.f32 0.0, %v1730
        %v1732 = vpop.f32.mrb[0].mxu0
        %v1733 = vpop.f32.mrb[0].mxu0
        %v1734 = vpop.f32.mrb[0].mxu0
        %1735 = vdwg.mxu0
        %v1737 = vsel %vm1324, %v1594, 0
        %1739 = vmatprep.subr.bf16.mxu0 0
        %1740 = vmatpush1.bf16.msra.mxu0 %v1602
        %1741 = vmatprep.subr.bf16.mxu0 0
        %1742 = vmatpush1.bf16.msra.mxu0 0
        %1743 = vmatprep.subr.bf16.mxu0 0
        %1744 = vmatpush1.bf16.msra.mxu0 0
        %1745 = vmatprep.subr.bf16.mxu0 0
        %1746 = vmatpush1.bf16.msra.mxu0 0
        %1747 = vmatprep.subr.bf16.mxu0 0
        %1748 = vmatpush1.bf16.msra.mxu0 0
        %1749 = vmatprep.subr.bf16.mxu0 0
        %1750 = vmatpush1.bf16.msra.mxu0 0
        %1751 = vmatprep.subr.bf16.mxu0 0
        %1752 = vmatpush1.bf16.msra.mxu0 0
        %1753 = vmatprep.subr.bf16.mxu0 0
        %1754 = vmatpush1.bf16.msra.mxu0 0
        %1755 = vmatprep.subr.bf16.mxu0 0
        %1756 = vmatpush1.bf16.msra.mxu0 0
        %1757 = vmatprep.subr.bf16.mxu0 0
        %1758 = vmatpush1.bf16.msra.mxu0 0
        %1759 = vmatprep.subr.bf16.mxu0 0
        %1760 = vmatpush1.bf16.msra.mxu0 0
        %1761 = vmatprep.subr.bf16.mxu0 0
        %1762 = vmatpush1.bf16.msra.mxu0 0
        %1763 = vmatprep.subr.bf16.mxu0 0
        %1764 = vmatpush1.bf16.msra.mxu0 0
        %1765 = vmatprep.subr.bf16.mxu0 0
        %1766 = vmatpush1.bf16.msra.mxu0 0
        %1767 = vmatprep.subr.bf16.mxu0 0
        %1768 = vmatpush1.bf16.msra.mxu0 0
        %1769 = vmatprep.subr.bf16.mxu0 0
        %1770 = vmatpush1.bf16.msra.mxu0 0
        %1771 = vmatprep.mubr.bf16.mxu0 0
        %1772 = vmatmul.mubr.bf16.gmra.mrb[0].mxu0 %v1737
        %v1773 = vpop.f32.mrb[0].mxu0
        %v1774 = vadd.f32 0.0, %v1773
        %v1775 = vpop.f32.mrb[0].mxu0
        %v1776 = vpop.f32.mrb[0].mxu0
        %v1777 = vpop.f32.mrb[0].mxu0
        %1778 = vdwg.mxu0
        %v1780 = vsel %vm1324, %v1595, 0
        %1782 = vmatprep.subr.bf16.mxu0 0
        %1783 = vmatpush1.bf16.msra.mxu0 %v1603
        %1784 = vmatprep.subr.bf16.mxu0 0
        %1785 = vmatpush1.bf16.msra.mxu0 0
        %1786 = vmatprep.subr.bf16.mxu0 0
        %1787 = vmatpush1.bf16.msra.mxu0 0
        %1788 = vmatprep.subr.bf16.mxu0 0
        %1789 = vmatpush1.bf16.msra.mxu0 0
        %1790 = vmatprep.subr.bf16.mxu0 0
        %1791 = vmatpush1.bf16.msra.mxu0 0
        %1792 = vmatprep.subr.bf16.mxu0 0
        %1793 = vmatpush1.bf16.msra.mxu0 0
        %1794 = vmatprep.subr.bf16.mxu0 0
        %1795 = vmatpush1.bf16.msra.mxu0 0
        %1796 = vmatprep.subr.bf16.mxu0 0
        %1797 = vmatpush1.bf16.msra.mxu0 0
        %1798 = vmatprep.subr.bf16.mxu0 0
        %1799 = vmatpush1.bf16.msra.mxu0 0
        %1800 = vmatprep.subr.bf16.mxu0 0
        %1801 = vmatpush1.bf16.msra.mxu0 0
        %1802 = vmatprep.subr.bf16.mxu0 0
        %1803 = vmatpush1.bf16.msra.mxu0 0
        %1804 = vmatprep.subr.bf16.mxu0 0
        %1805 = vmatpush1.bf16.msra.mxu0 0
        %1806 = vmatprep.subr.bf16.mxu0 0
        %1807 = vmatpush1.bf16.msra.mxu0 0
        %1808 = vmatprep.subr.bf16.mxu0 0
        %1809 = vmatpush1.bf16.msra.mxu0 0
        %1810 = vmatprep.subr.bf16.mxu0 0
        %1811 = vmatpush1.bf16.msra.mxu0 0
        %1812 = vmatprep.subr.bf16.mxu0 0
        %1813 = vmatpush1.bf16.msra.mxu0 0
        %1814 = vmatprep.mubr.bf16.mxu0 0
        %1815 = vmatmul.mubr.bf16.gmra.mrb[0].mxu0 %v1780
        %v1816 = vpop.f32.mrb[0].mxu0
        %v1817 = vadd.f32 0.0, %v1816
        %v1818 = vpop.f32.mrb[0].mxu0
        %v1819 = vpop.f32.mrb[0].mxu0
        %v1820 = vpop.f32.mrb[0].mxu0
        %1821 = vdwg.mxu0
        %v1823 = vsel %vm1324, %v1596, 0
        %1825 = vmatprep.subr.bf16.mxu0 0
        %1826 = vmatpush1.bf16.msra.mxu0 %v1604
        %1827 = vmatprep.subr.bf16.mxu0 0
        %1828 = vmatpush1.bf16.msra.mxu0 0
        %1829 = vmatprep.subr.bf16.mxu0 0
        %1830 = vmatpush1.bf16.msra.mxu0 0
        %1831 = vmatprep.subr.bf16.mxu0 0
        %1832 = vmatpush1.bf16.msra.mxu0 0
        %1833 = vmatprep.subr.bf16.mxu0 0
        %1834 = vmatpush1.bf16.msra.mxu0 0
        %1835 = vmatprep.subr.bf16.mxu0 0
        %1836 = vmatpush1.bf16.msra.mxu0 0
        %1837 = vmatprep.subr.bf16.mxu0 0
        %1838 = vmatpush1.bf16.msra.mxu0 0
        %1839 = vmatprep.subr.bf16.mxu0 0
        %1840 = vmatpush1.bf16.msra.mxu0 0
        %1841 = vmatprep.subr.bf16.mxu0 0
        %1842 = vmatpush1.bf16.msra.mxu0 0
        %1843 = vmatprep.subr.bf16.mxu0 0
        %1844 = vmatpush1.bf16.msra.mxu0 0
        %1845 = vmatprep.subr.bf16.mxu0 0
        %1846 = vmatpush1.bf16.msra.mxu0 0
        %1847 = vmatprep.subr.bf16.mxu0 0
        %1848 = vmatpush1.bf16.msra.mxu0 0
        %1849 = vmatprep.subr.bf16.mxu0 0
        %1850 = vmatpush1.bf16.msra.mxu0 0
        %1851 = vmatprep.subr.bf16.mxu0 0
        %1852 = vmatpush1.bf16.msra.mxu0 0
        %1853 = vmatprep.subr.bf16.mxu0 0
        %1854 = vmatpush1.bf16.msra.mxu0 0
        %1855 = vmatprep.subr.bf16.mxu0 0
        %1856 = vmatpush1.bf16.msra.mxu0 0
        %1857 = vmatprep.mubr.bf16.mxu0 0
        %1858 = vmatmul.mubr.bf16.gmra.mrb[0].mxu0 %v1823
        %v1859 = vpop.f32.mrb[0].mxu0
        %v1860 = vadd.f32 0.0, %v1859
        %v1861 = vpop.f32.mrb[0].mxu0
        %v1862 = vpop.f32.mrb[0].mxu0
        %v1863 = vpop.f32.mrb[0].mxu0
        %1864 = vdwg.mxu0
        %v1866 = vsel %vm1324, %v1597, 0
        %1868 = vmatprep.subr.bf16.mxu0 0
        %1869 = vmatpush1.bf16.msra.mxu0 %v1605
        %1870 = vmatprep.subr.bf16.mxu0 0
        %1871 = vmatpush1.bf16.msra.mxu0 0
        %1872 = vmatprep.subr.bf16.mxu0 0
        %1873 = vmatpush1.bf16.msra.mxu0 0
        %1874 = vmatprep.subr.bf16.mxu0 0
        %1875 = vmatpush1.bf16.msra.mxu0 0
        %1876 = vmatprep.subr.bf16.mxu0 0
        %1877 = vmatpush1.bf16.msra.mxu0 0
        %1878 = vmatprep.subr.bf16.mxu0 0
        %1879 = vmatpush1.bf16.msra.mxu0 0
        %1880 = vmatprep.subr.bf16.mxu0 0
        %1881 = vmatpush1.bf16.msra.mxu0 0
        %1882 = vmatprep.subr.bf16.mxu0 0
        %1883 = vmatpush1.bf16.msra.mxu0 0
        %1884 = vmatprep.subr.bf16.mxu0 0
        %1885 = vmatpush1.bf16.msra.mxu0 0
        %1886 = vmatprep.subr.bf16.mxu0 0
        %1887 = vmatpush1.bf16.msra.mxu0 0
        %1888 = vmatprep.subr.bf16.mxu0 0
        %1889 = vmatpush1.bf16.msra.mxu0 0
        %1890 = vmatprep.subr.bf16.mxu0 0
        %1891 = vmatpush1.bf16.msra.mxu0 0
        %1892 = vmatprep.subr.bf16.mxu0 0
        %1893 = vmatpush1.bf16.msra.mxu0 0
        %1894 = vmatprep.subr.bf16.mxu0 0
        %1895 = vmatpush1.bf16.msra.mxu0 0
        %1896 = vmatprep.subr.bf16.mxu0 0
        %1897 = vmatpush1.bf16.msra.mxu0 0
        %1898 = vmatprep.subr.bf16.mxu0 0
        %1899 = vmatpush1.bf16.msra.mxu0 0
        %1900 = vmatprep.mubr.bf16.mxu0 0
        %1901 = vmatmul.mubr.bf16.gmra.mrb[0].mxu0 %v1866
        %v1902 = vpop.f32.mrb[0].mxu0
        %v1903 = vadd.f32 0.0, %v1902
        %v1904 = vpop.f32.mrb[0].mxu0
        %v1905 = vpop.f32.mrb[0].mxu0
        %v1906 = vpop.f32.mrb[0].mxu0
        %1907 = vdwg.mxu0
        %v1909 = vsel %vm1324, %v1598, 0
        %1911 = vmatprep.subr.bf16.mxu0 0
        %1912 = vmatpush1.bf16.msra.mxu0 %v1606
        %1913 = vmatprep.subr.bf16.mxu0 0
        %1914 = vmatpush1.bf16.msra.mxu0 0
        %1915 = vmatprep.subr.bf16.mxu0 0
        %1916 = vmatpush1.bf16.msra.mxu0 0
        %1917 = vmatprep.subr.bf16.mxu0 0
        %1918 = vmatpush1.bf16.msra.mxu0 0
        %1919 = vmatprep.subr.bf16.mxu0 0
        %1920 = vmatpush1.bf16.msra.mxu0 0
        %1921 = vmatprep.subr.bf16.mxu0 0
        %1922 = vmatpush1.bf16.msra.mxu0 0
        %1923 = vmatprep.subr.bf16.mxu0 0
        %1924 = vmatpush1.bf16.msra.mxu0 0
        %1925 = vmatprep.subr.bf16.mxu0 0
        %1926 = vmatpush1.bf16.msra.mxu0 0
        %1927 = vmatprep.subr.bf16.mxu0 0
        %1928 = vmatpush1.bf16.msra.mxu0 0
        %1929 = vmatprep.subr.bf16.mxu0 0
        %1930 = vmatpush1.bf16.msra.mxu0 0
        %1931 = vmatprep.subr.bf16.mxu0 0
        %1932 = vmatpush1.bf16.msra.mxu0 0
        %1933 = vmatprep.subr.bf16.mxu0 0
        %1934 = vmatpush1.bf16.msra.mxu0 0
        %1935 = vmatprep.subr.bf16.mxu0 0
        %1936 = vmatpush1.bf16.msra.mxu0 0
        %1937 = vmatprep.subr.bf16.mxu0 0
        %1938 = vmatpush1.bf16.msra.mxu0 0
        %1939 = vmatprep.subr.bf16.mxu0 0
        %1940 = vmatpush1.bf16.msra.mxu0 0
        %1941 = vmatprep.subr.bf16.mxu0 0
        %1942 = vmatpush1.bf16.msra.mxu0 0
        %1943 = vmatprep.mubr.bf16.mxu0 0
        %1944 = vmatmul.mubr.bf16.gmra.mrb[0].mxu0 %v1909
        %v1945 = vpop.f32.mrb[0].mxu0
        %v1946 = vadd.f32 0.0, %v1945
        %v1947 = vpop.f32.mrb[0].mxu0
        %v1948 = vpop.f32.mrb[0].mxu0
        %v1949 = vpop.f32.mrb[0].mxu0
        %1950 = vdwg.mxu0
        %v1951 = vpack.c.bf16 %v1645, %v1645
        %v1952 = vpack.c.bf16 %v1688, %v1688
        %v1953 = vpack.c.bf16 %v1731, %v1731
        %v1954 = vpack.c.bf16 %v1774, %v1774
        %v1955 = vpack.c.bf16 %v1817, %v1817
        %v1956 = vpack.c.bf16 %v1860, %v1860
        %v1957 = vpack.c.bf16 %v1903, %v1903
        %v1958 = vpack.c.bf16 %v1946, %v1946
        %v1959 = vld [vmem:[%s5] sm:$0xf]
        %v1960 = vld [vmem:[%s5 + $0x4] sm:$0xf]
        %v1961 = vld [vmem:[%s5 + $0x8] sm:$0xf]
        %v1962 = vld [vmem:[%s5 + $0xc] sm:$0xf]
        %v1963 = vld [vmem:[%s5 + $0x10] sm:$0xf]
        %v1964 = vld [vmem:[%s5 + $0x14] sm:$0xf]
        %v1965 = vld [vmem:[%s5 + $0x18] sm:$0xf]
        %v1966 = vld [vmem:[%s5 + $0x1c] sm:$0xf]
        %v1967 = vld [vmem:[%s5 + $0x20] sm:$0xf]
        %v1968 = vld [vmem:[%s5 + $0x24] sm:$0xf]
        %v1969 = vld [vmem:[%s5 + $0x28] sm:$0xf]
        %v1970 = vld [vmem:[%s5 + $0x2c] sm:$0xf]
        %v1971 = vld [vmem:[%s5 + $0x30] sm:$0xf]
        %v1972 = vld [vmem:[%s5 + $0x34] sm:$0xf]
        %v1973 = vld [vmem:[%s5 + $0x38] sm:$0xf]
        %v1974 = vld [vmem:[%s5 + $0x3c] sm:$0xf]
        %v1975 = vld [vmem:[%s5 + $0x40] sm:$0xf]
        %v1976 = vld [vmem:[%s5 + $0x44] sm:$0xf]
        %v1977 = vld [vmem:[%s5 + $0x48] sm:$0xf]
        %v1978 = vld [vmem:[%s5 + $0x4c] sm:$0xf]
        %v1979 = vld [vmem:[%s5 + $0x50] sm:$0xf]
        %v1980 = vld [vmem:[%s5 + $0x54] sm:$0xf]
        %v1981 = vld [vmem:[%s5 + $0x58] sm:$0xf]
        %v1982 = vld [vmem:[%s5 + $0x5c] sm:$0xf]
        %v1983 = vld [vmem:[%s5 + $0x60] sm:$0xf]
        %v1984 = vld [vmem:[%s5 + $0x64] sm:$0xf]
        %v1985 = vld [vmem:[%s5 + $0x68] sm:$0xf]
        %v1986 = vld [vmem:[%s5 + $0x6c] sm:$0xf]
        %v1987 = vld [vmem:[%s5 + $0x70] sm:$0xf]
        %v1988 = vld [vmem:[%s5 + $0x74] sm:$0xf]
        %v1989 = vld [vmem:[%s5 + $0x78] sm:$0xf]
        %v1990 = vld [vmem:[%s5 + $0x7c] sm:$0xf]
        %v1995 = vunpack.c.l.b16 %v1959
        %v1996 = vunpack.c.l.b16 %v1960
        %v1997 = vunpack.c.l.b16 %v1961
        %v1998 = vunpack.c.l.b16 %v1962
        %v1999 = vpack.c.b16 %v1996, %v1995
        %v2000 = vpack.c.b16 %v1998, %v1997
        %v2002 = vsel %vm955, %v1951, 0
        %v2005 = vsel %vm955, %v1999, 0
        %v2008 = vsel %vm955, %v2000, 0
        %2010 = vmatprep.subr.bf16.mxu0 0
        %2011 = vmatpush1.bf16.xpose.msra.mxu0 %v2005
        %2012 = vmatprep.subr.bf16.mxu0 0
        %2013 = vmatpush1.bf16.xpose.msra.mxu0 %v2008
        %2014 = vmatprep.subr.bf16.mxu0 0
        %2015 = vmatpush1.bf16.xpose.msra.mxu0 0
        %2016 = vmatprep.subr.bf16.mxu0 0
        %2017 = vmatpush1.bf16.xpose.msra.mxu0 0
        %2018 = vmatprep.subr.bf16.mxu0 0
        %2019 = vmatpush1.bf16.xpose.msra.mxu0 0
        %2020 = vmatprep.subr.bf16.mxu0 0
        %2021 = vmatpush1.bf16.xpose.msra.mxu0 0
        %2022 = vmatprep.subr.bf16.mxu0 0
        %2023 = vmatpush1.bf16.xpose.msra.mxu0 0
        %2024 = vmatprep.subr.bf16.mxu0 0
        %2025 = vmatpush1.bf16.xpose.msra.mxu0 0
        %2026 = vmatprep.subr.bf16.mxu0 0
        %2027 = vmatpush1.bf16.xpose.msra.mxu0 0
        %2028 = vmatprep.subr.bf16.mxu0 0
        %2029 = vmatpush1.bf16.xpose.msra.mxu0 0
        %2030 = vmatprep.subr.bf16.mxu0 0
        %2031 = vmatpush1.bf16.xpose.msra.mxu0 0
        %2032 = vmatprep.subr.bf16.mxu0 0
        %2033 = vmatpush1.bf16.xpose.msra.mxu0 0
        %2034 = vmatprep.subr.bf16.mxu0 0
        %2035 = vmatpush1.bf16.xpose.msra.mxu0 0
        %2036 = vmatprep.subr.bf16.mxu0 0
        %2037 = vmatpush1.bf16.xpose.msra.mxu0 0
        %2038 = vmatprep.subr.bf16.mxu0 0
        %2039 = vmatpush1.bf16.xpose.msra.mxu0 0
        %2040 = vmatprep.subr.bf16.mxu0 0
        %2041 = vmatpush1.bf16.xpose.msra.mxu0 0
        %2042 = vmatprep.mubr.bf16.mxu0 0
        %2043 = vmatmul.mubr.bf16.gmra.mrb[0].mxu0 %v2002
        %v2044 = vpop.f32.mrb[0].mxu0
        %v2045 = vadd.f32 0.0, %v2044
        %v2046 = vpop.f32.mrb[0].mxu0
        %v2047 = vpop.f32.mrb[0].mxu0
        %v2048 = vpop.f32.mrb[0].mxu0
        %2049 = vdwg.mxu0
        %v2054 = vunpack.c.l.b16 %v1963
        %v2055 = vunpack.c.l.b16 %v1964
        %v2056 = vunpack.c.l.b16 %v1965
        %v2057 = vunpack.c.l.b16 %v1966
        %v2058 = vpack.c.b16 %v2055, %v2054
        %v2059 = vpack.c.b16 %v2057, %v2056
        %v2061 = vsel %vm955, %v1952, 0
        %v2064 = vsel %vm955, %v2058, 0
        %v2067 = vsel %vm955, %v2059, 0
        %2069 = vmatprep.subr.bf16.mxu0 0
        %2070 = vmatpush1.bf16.xpose.msra.mxu0 %v2064
        %2071 = vmatprep.subr.bf16.mxu0 0
        %2072 = vmatpush1.bf16.xpose.msra.mxu0 %v2067
        %2073 = vmatprep.subr.bf16.mxu0 0
        %2074 = vmatpush1.bf16.xpose.msra.mxu0 0
        %2075 = vmatprep.subr.bf16.mxu0 0
        %2076 = vmatpush1.bf16.xpose.msra.mxu0 0
        %2077 = vmatprep.subr.bf16.mxu0 0
        %2078 = vmatpush1.bf16.xpose.msra.mxu0 0
        %2079 = vmatprep.subr.bf16.mxu0 0
        %2080 = vmatpush1.bf16.xpose.msra.mxu0 0
        %2081 = vmatprep.subr.bf16.mxu0 0
        %2082 = vmatpush1.bf16.xpose.msra.mxu0 0
        %2083 = vmatprep.subr.bf16.mxu0 0
        %2084 = vmatpush1.bf16.xpose.msra.mxu0 0
        %2085 = vmatprep.subr.bf16.mxu0 0
        %2086 = vmatpush1.bf16.xpose.msra.mxu0 0
        %2087 = vmatprep.subr.bf16.mxu0 0
        %2088 = vmatpush1.bf16.xpose.msra.mxu0 0
        %2089 = vmatprep.subr.bf16.mxu0 0
        %2090 = vmatpush1.bf16.xpose.msra.mxu0 0
        %2091 = vmatprep.subr.bf16.mxu0 0
        %2092 = vmatpush1.bf16.xpose.msra.mxu0 0
        %2093 = vmatprep.subr.bf16.mxu0 0
        %2094 = vmatpush1.bf16.xpose.msra.mxu0 0
        %2095 = vmatprep.subr.bf16.mxu0 0
        %2096 = vmatpush1.bf16.xpose.msra.mxu0 0
        %2097 = vmatprep.subr.bf16.mxu0 0
        %2098 = vmatpush1.bf16.xpose.msra.mxu0 0
        %2099 = vmatprep.subr.bf16.mxu0 0
        %2100 = vmatpush1.bf16.xpose.msra.mxu0 0
        %2101 = vmatprep.mubr.bf16.mxu0 0
        %2102 = vmatmul.mubr.bf16.gmra.mrb[0].mxu0 %v2061
        %v2103 = vpop.f32.mrb[0].mxu0
        %v2104 = vadd.f32 0.0, %v2103
        %v2105 = vpop.f32.mrb[0].mxu0
        %v2106 = vpop.f32.mrb[0].mxu0
        %v2107 = vpop.f32.mrb[0].mxu0
        %2108 = vdwg.mxu0
        %v2113 = vunpack.c.l.b16 %v1967
        %v2114 = vunpack.c.l.b16 %v1968
        %v2115 = vunpack.c.l.b16 %v1969
        %v2116 = vunpack.c.l.b16 %v1970
        %v2117 = vpack.c.b16 %v2114, %v2113
        %v2118 = vpack.c.b16 %v2116, %v2115
        %v2120 = vsel %vm955, %v1953, 0
        %v2123 = vsel %vm955, %v2117, 0
        %v2126 = vsel %vm955, %v2118, 0
        %2128 = vmatprep.subr.bf16.mxu0 0
        %2129 = vmatpush1.bf16.xpose.msra.mxu0 %v2123
        %2130 = vmatprep.subr.bf16.mxu0 0
        %2131 = vmatpush1.bf16.xpose.msra.mxu0 %v2126
        %2132 = vmatprep.subr.bf16.mxu0 0
        %2133 = vmatpush1.bf16.xpose.msra.mxu0 0
        %2134 = vmatprep.subr.bf16.mxu0 0
        %2135 = vmatpush1.bf16.xpose.msra.mxu0 0
        %2136 = vmatprep.subr.bf16.mxu0 0
        %2137 = vmatpush1.bf16.xpose.msra.mxu0 0
        %2138 = vmatprep.subr.bf16.mxu0 0
        %2139 = vmatpush1.bf16.xpose.msra.mxu0 0
        %2140 = vmatprep.subr.bf16.mxu0 0
        %2141 = vmatpush1.bf16.xpose.msra.mxu0 0
        %2142 = vmatprep.subr.bf16.mxu0 0
        %2143 = vmatpush1.bf16.xpose.msra.mxu0 0
        %2144 = vmatprep.subr.bf16.mxu0 0
        %2145 = vmatpush1.bf16.xpose.msra.mxu0 0
        %2146 = vmatprep.subr.bf16.mxu0 0
        %2147 = vmatpush1.bf16.xpose.msra.mxu0 0
        %2148 = vmatprep.subr.bf16.mxu0 0
        %2149 = vmatpush1.bf16.xpose.msra.mxu0 0
        %2150 = vmatprep.subr.bf16.mxu0 0
        %2151 = vmatpush1.bf16.xpose.msra.mxu0 0
        %2152 = vmatprep.subr.bf16.mxu0 0
        %2153 = vmatpush1.bf16.xpose.msra.mxu0 0
        %2154 = vmatprep.subr.bf16.mxu0 0
        %2155 = vmatpush1.bf16.xpose.msra.mxu0 0
        %2156 = vmatprep.subr.bf16.mxu0 0
        %2157 = vmatpush1.bf16.xpose.msra.mxu0 0
        %2158 = vmatprep.subr.bf16.mxu0 0
        %2159 = vmatpush1.bf16.xpose.msra.mxu0 0
        %2160 = vmatprep.mubr.bf16.mxu0 0
        %2161 = vmatmul.mubr.bf16.gmra.mrb[0].mxu0 %v2120
        %v2162 = vpop.f32.mrb[0].mxu0
        %v2163 = vadd.f32 0.0, %v2162
        %v2164 = vpop.f32.mrb[0].mxu0
        %v2165 = vpop.f32.mrb[0].mxu0
        %v2166 = vpop.f32.mrb[0].mxu0
        %2167 = vdwg.mxu0
        %v2172 = vunpack.c.l.b16 %v1971
        %v2173 = vunpack.c.l.b16 %v1972
        %v2174 = vunpack.c.l.b16 %v1973
        %v2175 = vunpack.c.l.b16 %v1974
        %v2176 = vpack.c.b16 %v2173, %v2172
        %v2177 = vpack.c.b16 %v2175, %v2174
        %v2179 = vsel %vm955, %v1954, 0
        %v2182 = vsel %vm955, %v2176, 0
        %v2185 = vsel %vm955, %v2177, 0
        %2187 = vmatprep.subr.bf16.mxu0 0
        %2188 = vmatpush1.bf16.xpose.msra.mxu0 %v2182
        %2189 = vmatprep.subr.bf16.mxu0 0
        %2190 = vmatpush1.bf16.xpose.msra.mxu0 %v2185
        %2191 = vmatprep.subr.bf16.mxu0 0
        %2192 = vmatpush1.bf16.xpose.msra.mxu0 0
        %2193 = vmatprep.subr.bf16.mxu0 0
        %2194 = vmatpush1.bf16.xpose.msra.mxu0 0
        %2195 = vmatprep.subr.bf16.mxu0 0
        %2196 = vmatpush1.bf16.xpose.msra.mxu0 0
        %2197 = vmatprep.subr.bf16.mxu0 0
        %2198 = vmatpush1.bf16.xpose.msra.mxu0 0
        %2199 = vmatprep.subr.bf16.mxu0 0
        %2200 = vmatpush1.bf16.xpose.msra.mxu0 0
        %2201 = vmatprep.subr.bf16.mxu0 0
        %2202 = vmatpush1.bf16.xpose.msra.mxu0 0
        %2203 = vmatprep.subr.bf16.mxu0 0
        %2204 = vmatpush1.bf16.xpose.msra.mxu0 0
        %2205 = vmatprep.subr.bf16.mxu0 0
        %2206 = vmatpush1.bf16.xpose.msra.mxu0 0
        %2207 = vmatprep.subr.bf16.mxu0 0
        %2208 = vmatpush1.bf16.xpose.msra.mxu0 0
        %2209 = vmatprep.subr.bf16.mxu0 0
        %2210 = vmatpush1.bf16.xpose.msra.mxu0 0
        %2211 = vmatprep.subr.bf16.mxu0 0
        %2212 = vmatpush1.bf16.xpose.msra.mxu0 0
        %2213 = vmatprep.subr.bf16.mxu0 0
        %2214 = vmatpush1.bf16.xpose.msra.mxu0 0
        %2215 = vmatprep.subr.bf16.mxu0 0
        %2216 = vmatpush1.bf16.xpose.msra.mxu0 0
        %2217 = vmatprep.subr.bf16.mxu0 0
        %2218 = vmatpush1.bf16.xpose.msra.mxu0 0
        %2219 = vmatprep.mubr.bf16.mxu0 0
        %2220 = vmatmul.mubr.bf16.gmra.mrb[0].mxu0 %v2179
        %v2221 = vpop.f32.mrb[0].mxu0
        %v2222 = vadd.f32 0.0, %v2221
        %v2223 = vpop.f32.mrb[0].mxu0
        %v2224 = vpop.f32.mrb[0].mxu0
        %v2225 = vpop.f32.mrb[0].mxu0
        %2226 = vdwg.mxu0
        %v2231 = vunpack.c.l.b16 %v1975
        %v2232 = vunpack.c.l.b16 %v1976
        %v2233 = vunpack.c.l.b16 %v1977
        %v2234 = vunpack.c.l.b16 %v1978
        %v2235 = vpack.c.b16 %v2232, %v2231
        %v2236 = vpack.c.b16 %v2234, %v2233
        %v2238 = vsel %vm955, %v1955, 0
        %v2241 = vsel %vm955, %v2235, 0
        %v2244 = vsel %vm955, %v2236, 0
        %2246 = vmatprep.subr.bf16.mxu0 0
        %2247 = vmatpush1.bf16.xpose.msra.mxu0 %v2241
        %2248 = vmatprep.subr.bf16.mxu0 0
        %2249 = vmatpush1.bf16.xpose.msra.mxu0 %v2244
        %2250 = vmatprep.subr.bf16.mxu0 0
        %2251 = vmatpush1.bf16.xpose.msra.mxu0 0
        %2252 = vmatprep.subr.bf16.mxu0 0
        %2253 = vmatpush1.bf16.xpose.msra.mxu0 0
        %2254 = vmatprep.subr.bf16.mxu0 0
        %2255 = vmatpush1.bf16.xpose.msra.mxu0 0
        %2256 = vmatprep.subr.bf16.mxu0 0
        %2257 = vmatpush1.bf16.xpose.msra.mxu0 0
        %2258 = vmatprep.subr.bf16.mxu0 0
        %2259 = vmatpush1.bf16.xpose.msra.mxu0 0
        %2260 = vmatprep.subr.bf16.mxu0 0
        %2261 = vmatpush1.bf16.xpose.msra.mxu0 0
        %2262 = vmatprep.subr.bf16.mxu0 0
        %2263 = vmatpush1.bf16.xpose.msra.mxu0 0
        %2264 = vmatprep.subr.bf16.mxu0 0
        %2265 = vmatpush1.bf16.xpose.msra.mxu0 0
        %2266 = vmatprep.subr.bf16.mxu0 0
        %2267 = vmatpush1.bf16.xpose.msra.mxu0 0
        %2268 = vmatprep.subr.bf16.mxu0 0
        %2269 = vmatpush1.bf16.xpose.msra.mxu0 0
        %2270 = vmatprep.subr.bf16.mxu0 0
        %2271 = vmatpush1.bf16.xpose.msra.mxu0 0
        %2272 = vmatprep.subr.bf16.mxu0 0
        %2273 = vmatpush1.bf16.xpose.msra.mxu0 0
        %2274 = vmatprep.subr.bf16.mxu0 0
        %2275 = vmatpush1.bf16.xpose.msra.mxu0 0
        %2276 = vmatprep.subr.bf16.mxu0 0
        %2277 = vmatpush1.bf16.xpose.msra.mxu0 0
        %2278 = vmatprep.mubr.bf16.mxu0 0
        %2279 = vmatmul.mubr.bf16.gmra.mrb[0].mxu0 %v2238
        %v2280 = vpop.f32.mrb[0].mxu0
        %v2281 = vadd.f32 0.0, %v2280
        %v2282 = vpop.f32.mrb[0].mxu0
        %v2283 = vpop.f32.mrb[0].mxu0
        %v2284 = vpop.f32.mrb[0].mxu0
        %2285 = vdwg.mxu0
        %v2290 = vunpack.c.l.b16 %v1979
        %v2291 = vunpack.c.l.b16 %v1980
        %v2292 = vunpack.c.l.b16 %v1981
        %v2293 = vunpack.c.l.b16 %v1982
        %v2294 = vpack.c.b16 %v2291, %v2290
        %v2295 = vpack.c.b16 %v2293, %v2292
        %v2297 = vsel %vm955, %v1956, 0
        %v2300 = vsel %vm955, %v2294, 0
        %v2303 = vsel %vm955, %v2295, 0
        %2305 = vmatprep.subr.bf16.mxu0 0
        %2306 = vmatpush1.bf16.xpose.msra.mxu0 %v2300
        %2307 = vmatprep.subr.bf16.mxu0 0
        %2308 = vmatpush1.bf16.xpose.msra.mxu0 %v2303
        %2309 = vmatprep.subr.bf16.mxu0 0
        %2310 = vmatpush1.bf16.xpose.msra.mxu0 0
        %2311 = vmatprep.subr.bf16.mxu0 0
        %2312 = vmatpush1.bf16.xpose.msra.mxu0 0
        %2313 = vmatprep.subr.bf16.mxu0 0
        %2314 = vmatpush1.bf16.xpose.msra.mxu0 0
        %2315 = vmatprep.subr.bf16.mxu0 0
        %2316 = vmatpush1.bf16.xpose.msra.mxu0 0
        %2317 = vmatprep.subr.bf16.mxu0 0
        %2318 = vmatpush1.bf16.xpose.msra.mxu0 0
        %2319 = vmatprep.subr.bf16.mxu0 0
        %2320 = vmatpush1.bf16.xpose.msra.mxu0 0
        %2321 = vmatprep.subr.bf16.mxu0 0
        %2322 = vmatpush1.bf16.xpose.msra.mxu0 0
        %2323 = vmatprep.subr.bf16.mxu0 0
        %2324 = vmatpush1.bf16.xpose.msra.mxu0 0
        %2325 = vmatprep.subr.bf16.mxu0 0
        %2326 = vmatpush1.bf16.xpose.msra.mxu0 0
        %2327 = vmatprep.subr.bf16.mxu0 0
        %2328 = vmatpush1.bf16.xpose.msra.mxu0 0
        %2329 = vmatprep.subr.bf16.mxu0 0
        %2330 = vmatpush1.bf16.xpose.msra.mxu0 0
        %2331 = vmatprep.subr.bf16.mxu0 0
        %2332 = vmatpush1.bf16.xpose.msra.mxu0 0
        %2333 = vmatprep.subr.bf16.mxu0 0
        %2334 = vmatpush1.bf16.xpose.msra.mxu0 0
        %2335 = vmatprep.subr.bf16.mxu0 0
        %2336 = vmatpush1.bf16.xpose.msra.mxu0 0
        %2337 = vmatprep.mubr.bf16.mxu0 0
        %2338 = vmatmul.mubr.bf16.gmra.mrb[0].mxu0 %v2297
        %v2339 = vpop.f32.mrb[0].mxu0
        %v2340 = vadd.f32 0.0, %v2339
        %v2341 = vpop.f32.mrb[0].mxu0
        %v2342 = vpop.f32.mrb[0].mxu0
        %v2343 = vpop.f32.mrb[0].mxu0
        %2344 = vdwg.mxu0
        %v2349 = vunpack.c.l.b16 %v1983
        %v2350 = vunpack.c.l.b16 %v1984
        %v2351 = vunpack.c.l.b16 %v1985
        %v2352 = vunpack.c.l.b16 %v1986
        %v2353 = vpack.c.b16 %v2350, %v2349
        %v2354 = vpack.c.b16 %v2352, %v2351
        %v2356 = vsel %vm955, %v1957, 0
        %v2359 = vsel %vm955, %v2353, 0
        %v2362 = vsel %vm955, %v2354, 0
        %2364 = vmatprep.subr.bf16.mxu0 0
        %2365 = vmatpush1.bf16.xpose.msra.mxu0 %v2359
        %2366 = vmatprep.subr.bf16.mxu0 0
        %2367 = vmatpush1.bf16.xpose.msra.mxu0 %v2362
        %2368 = vmatprep.subr.bf16.mxu0 0
        %2369 = vmatpush1.bf16.xpose.msra.mxu0 0
        %2370 = vmatprep.subr.bf16.mxu0 0
        %2371 = vmatpush1.bf16.xpose.msra.mxu0 0
        %2372 = vmatprep.subr.bf16.mxu0 0
        %2373 = vmatpush1.bf16.xpose.msra.mxu0 0
        %2374 = vmatprep.subr.bf16.mxu0 0
        %2375 = vmatpush1.bf16.xpose.msra.mxu0 0
        %2376 = vmatprep.subr.bf16.mxu0 0
        %2377 = vmatpush1.bf16.xpose.msra.mxu0 0
        %2378 = vmatprep.subr.bf16.mxu0 0
        %2379 = vmatpush1.bf16.xpose.msra.mxu0 0
        %2380 = vmatprep.subr.bf16.mxu0 0
        %2381 = vmatpush1.bf16.xpose.msra.mxu0 0
        %2382 = vmatprep.subr.bf16.mxu0 0
        %2383 = vmatpush1.bf16.xpose.msra.mxu0 0
        %2384 = vmatprep.subr.bf16.mxu0 0
        %2385 = vmatpush1.bf16.xpose.msra.mxu0 0
        %2386 = vmatprep.subr.bf16.mxu0 0
        %2387 = vmatpush1.bf16.xpose.msra.mxu0 0
        %2388 = vmatprep.subr.bf16.mxu0 0
        %2389 = vmatpush1.bf16.xpose.msra.mxu0 0
        %2390 = vmatprep.subr.bf16.mxu0 0
        %2391 = vmatpush1.bf16.xpose.msra.mxu0 0
        %2392 = vmatprep.subr.bf16.mxu0 0
        %2393 = vmatpush1.bf16.xpose.msra.mxu0 0
        %2394 = vmatprep.subr.bf16.mxu0 0
        %2395 = vmatpush1.bf16.xpose.msra.mxu0 0
        %2396 = vmatprep.mubr.bf16.mxu0 0
        %2397 = vmatmul.mubr.bf16.gmra.mrb[0].mxu0 %v2356
        %v2398 = vpop.f32.mrb[0].mxu0
        %v2399 = vadd.f32 0.0, %v2398
        %v2400 = vpop.f32.mrb[0].mxu0
        %v2401 = vpop.f32.mrb[0].mxu0
        %v2402 = vpop.f32.mrb[0].mxu0
        %2403 = vdwg.mxu0
        %v2408 = vunpack.c.l.b16 %v1987
        %v2409 = vunpack.c.l.b16 %v1988
        %v2410 = vunpack.c.l.b16 %v1989
        %v2411 = vunpack.c.l.b16 %v1990
        %v2412 = vpack.c.b16 %v2409, %v2408
        %v2413 = vpack.c.b16 %v2411, %v2410
        %v2415 = vsel %vm955, %v1958, 0
        %v2418 = vsel %vm955, %v2412, 0
        %v2421 = vsel %vm955, %v2413, 0
        %2423 = vmatprep.subr.bf16.mxu0 0
        %2424 = vmatpush1.bf16.xpose.msra.mxu0 %v2418
        %2425 = vmatprep.subr.bf16.mxu0 0
        %2426 = vmatpush1.bf16.xpose.msra.mxu0 %v2421
        %2427 = vmatprep.subr.bf16.mxu0 0
        %2428 = vmatpush1.bf16.xpose.msra.mxu0 0
        %2429 = vmatprep.subr.bf16.mxu0 0
        %2430 = vmatpush1.bf16.xpose.msra.mxu0 0
        %2431 = vmatprep.subr.bf16.mxu0 0
        %2432 = vmatpush1.bf16.xpose.msra.mxu0 0
        %2433 = vmatprep.subr.bf16.mxu0 0
        %2434 = vmatpush1.bf16.xpose.msra.mxu0 0
        %2435 = vmatprep.subr.bf16.mxu0 0
        %2436 = vmatpush1.bf16.xpose.msra.mxu0 0
        %2437 = vmatprep.subr.bf16.mxu0 0
        %2438 = vmatpush1.bf16.xpose.msra.mxu0 0
        %2439 = vmatprep.subr.bf16.mxu0 0
        %2440 = vmatpush1.bf16.xpose.msra.mxu0 0
        %2441 = vmatprep.subr.bf16.mxu0 0
        %2442 = vmatpush1.bf16.xpose.msra.mxu0 0
        %2443 = vmatprep.subr.bf16.mxu0 0
        %2444 = vmatpush1.bf16.xpose.msra.mxu0 0
        %2445 = vmatprep.subr.bf16.mxu0 0
        %2446 = vmatpush1.bf16.xpose.msra.mxu0 0
        %2447 = vmatprep.subr.bf16.mxu0 0
        %2448 = vmatpush1.bf16.xpose.msra.mxu0 0
        %2449 = vmatprep.subr.bf16.mxu0 0
        %2450 = vmatpush1.bf16.xpose.msra.mxu0 0
        %2451 = vmatprep.subr.bf16.mxu0 0
        %2452 = vmatpush1.bf16.xpose.msra.mxu0 0
        %2453 = vmatprep.subr.bf16.mxu0 0
        %2454 = vmatpush1.bf16.xpose.msra.mxu0 0
        %2455 = vmatprep.mubr.bf16.mxu0 0
        %2456 = vmatmul.mubr.bf16.gmra.mrb[0].mxu0 %v2415
        %v2457 = vpop.f32.mrb[0].mxu0
        %v2458 = vadd.f32 0.0, %v2457
        %v2459 = vpop.f32.mrb[0].mxu0
        %v2460 = vpop.f32.mrb[0].mxu0
        %v2461 = vpop.f32.mrb[0].mxu0
        %2462 = vdwg.mxu0
        %v2463 = vsel %vm583, %v2045, 0.0
        %v2464 = vsel %vm583, %v2104, 0.0
        %v2465 = vadd.f32 %v2463, %v2464
        %v2466 = vsel %vm583, %v2163, 0.0
        %v2467 = vadd.f32 %v2465, %v2466
        %v2468 = vsel %vm583, %v2222, 0.0
        %v2469 = vadd.f32 %v2467, %v2468
        %v2470 = vsel %vm583, %v2281, 0.0
        %v2471 = vadd.f32 %v2469, %v2470
        %v2472 = vsel %vm583, %v2340, 0.0
        %v2473 = vadd.f32 %v2471, %v2472
        %v2474 = vsel %vm583, %v2399, 0.0
        %v2475 = vadd.f32 %v2473, %v2474
        %v2476 = vsel %vm583, %v2458, 0.0
        %v2477 = vadd.f32 %v2475, %v2476
        %v2478 = vld [vmem:[%s6] sm:$0x1]
        %v2480 = vlaneseq
        %v2481 = vshrl.u32 %v2480, 7
        %v2482 = vsub.s32 0, %v2481
        %v2483 = vrot.slane %v2478, %v2482
        %v2485 = vadd.f32 %v2477, %v2483
        %2486 = vst.msk [vmem:[%s339] sm:$0xff] %vm583, %v2485
        %s2487 = sand.u32 %s207, 1
        %s2488 = scalar_lea.sflag [#allocation5], %s2487
        %s2489 = sand.u32 %s207, 1
        %s2490 = smul.addr %s2489, 8
        %s2491 = scalar_lea.vmem [#allocation4], %s2490
        %s2492 = sand.u32 %s235, 1
        %s2493 = scalar_lea.sflag [#allocation7], %s2492
        %s2494 = sand.u32 %s235, 1
        %s2495 = smul.addr %s2494, 4
        %s2496 = scalar_lea.vmem [#allocation6], %s2495
        // Predicated region
        $region53: #{tpu_custom_call.1} parent=47 // pred_check
          %p2497 = pneg %p217
        $region54: #{tpu_custom_call.1} parent=47 // pred_check_branch
          %2499 = sbr.rel (%p2497) target = $region56
        $region55: #{tpu_custom_call.1} parent=47 // pred_region
          %s2501 = ssub.s32 128, 128
          %2502 = vsyncadd %s2488, %s2501
          %s2503 = sadd.s32 %s31, %s30
          %s2504 = smul.addr %s2503, 128
          %s2505 = scalar_lea.hbm %s7, %s2504
          %s2507 = sshll.u32 %s2491, 4
          %s2508 = int_to_ptr.vmem [resolvable:$true] %s2507
          %2510 = dma.vmem_to_hbm [thread:$0]  %s2508, 128, %s2505, %s2488
        $region56: #{tpu_custom_call.1} parent=47 // pred_fallthru
          _
        // Predicated region
        $region57: #{tpu_custom_call.1} parent=47 // pred_check
          %p2511 = pneg %p245
        $region58: #{tpu_custom_call.1} parent=47 // pred_check_branch
          %2513 = sbr.rel (%p2511) target = $region60
        $region59: #{tpu_custom_call.1} parent=47 // pred_region
          %s2515 = ssub.s32 64, 64
          %2516 = vsyncadd %s2493, %s2515
          %s2517 = sadd.s32 %s31, %s30
          %s2518 = smul.addr %s2517, 64
          %s2519 = scalar_lea.hbm %s8, %s2518
          %s2521 = sshll.u32 %s2496, 4
          %s2522 = int_to_ptr.vmem [resolvable:$true] %s2521
          %2524 = dma.vmem_to_hbm [thread:$0]  %s2522, 64, %s2519, %s2493
        $region60: #{tpu_custom_call.1} parent=47 // pred_fallthru
          _
      $region48: #{tpu_custom_call.1} parent=5 // pred_fallthru
        _
      %p2525 = scmp.le.s32.totalorder 2, %s21
      // Predicated region
      $region61: #{tpu_custom_call.1} parent=5 // pred_check
        %p2526 = pneg %p2525
      $region62: #{tpu_custom_call.1} parent=5 // pred_check_branch
        %2528 = sbr.rel (%p2526) target = $region64
      $region63: #{tpu_custom_call.1} parent=5 // pred_region
        %s2529 = ssub.s32 %s21, 2
        // Predicated region
        $region65: #{tpu_custom_call.1} parent=63 // pred_check
          %p2530 = pneg %p223
        $region66: #{tpu_custom_call.1} parent=63 // pred_check_branch
          %2532 = sbr.rel (%p2530) target = $region68
        $region67: #{tpu_custom_call.1} parent=63 // pred_region
          %s2533 = sand.u32 %s208, 1
          %s2534 = scalar_lea.sflag [#allocation5], %s2533
          %s2535 = sand.u32 %s208, 1
          %s2536 = smul.addr %s2535, 8
          %s2537 = scalar_lea.vmem [#allocation4], %s2536
          %2538 = dma.done %s2534, 128
        $region68: #{tpu_custom_call.1} parent=63 // pred_fallthru
          _
        // Predicated region
        $region69: #{tpu_custom_call.1} parent=63 // pred_check
          %p2539 = pneg %p251
        $region70: #{tpu_custom_call.1} parent=63 // pred_check_branch
          %2541 = sbr.rel (%p2539) target = $region72
        $region71: #{tpu_custom_call.1} parent=63 // pred_region
          %s2542 = sand.u32 %s236, 1
          %s2543 = scalar_lea.sflag [#allocation7], %s2542
          %s2544 = sand.u32 %s236, 1
          %s2545 = smul.addr %s2544, 4
          %s2546 = scalar_lea.vmem [#allocation6], %s2545
          %2547 = dma.done %s2543, 64
        $region72: #{tpu_custom_call.1} parent=63 // pred_fallthru
          _
      $region64: #{tpu_custom_call.1} parent=5 // pred_fallthru
        _
    $region6: #{tpu_custom_call.1} parent=1 // loop_footer
      %s25 = sadd.s32 1, %s21
    $region7: #{tpu_custom_call.1} parent=1 // loop_footer_branch
      %20 = sbr.rel target = $region3
    $region8: #{tpu_custom_call.1} parent=1 // loop_exit
      _
    %2548 = vsyncpa [#allocation5], 1
    %s2549 = scalar_lea.sflag [#allocation5], 1
    %2550 = vsyncpa %s2549, 1
    %2551 = vsyncpa [#allocation7], 1
    %s2552 = scalar_lea.sflag [#allocation7], 1
    %2553 = vsyncpa %s2552, 1

</llo_original>
